<compile_context>
chip_gen: v6e
topology: v6e:2x2x1
jax: 0.10.0
libtpu: 0.0.40
codegen_flags: <defaults>
</compile_context>

<pallas_src>
import functools

import jax
import jax.numpy as jnp
from jax.experimental import pallas as pl
from jax.experimental.pallas import tpu as pltpu

THRESHOLD = 0.01


def _round_up(v, m):
    return ((v + m - 1) // m) * m


def _tpu_hw():
    """(physical VMEM bytes, TensorCores per chip) with safe fallbacks."""
    vmem_cap = 128 << 20
    num_cores = 1
    try:
        info = pltpu.get_tpu_info()
    except Exception:
        return vmem_cap, num_cores
    for name in ("vmem_capacity_bytes", "vmem_bytes"):
        try:
            v = int(getattr(info, name))
            if v > 0:
                vmem_cap = v
                break
        except (AttributeError, TypeError, ValueError):
            continue
    for name in ("num_cores", "tensorcores_per_chip", "num_tensorcores",
                 "cores_per_chip"):
        try:
            v = int(getattr(info, name))
            if v > 0:
                num_cores = min(v, 2)  # at most 2 TCs per chip on current HW
                break
        except (AttributeError, TypeError, ValueError):
            continue
    return vmem_cap, num_cores


def _sdf_loss_kernel(x_ref, y_ref, o_ref, acc_ref, *, n_rows, tile_n, sub,
                     steps_per_core, needs_mask):
    """Grid = (cores, row-tiles-per-core).  Each step streams a (tile_n, D)
    slab of x and y; an inner loop over (sub, D) chunks accumulates the
    weighted |x - y| into the (sub, D) f32 scratch.  The last step of each
    core's range collapses sub -> 1 and writes that core's partial sum."""
    c = pl.program_id(0)
    i = pl.program_id(1)

    @pl.when(i == 0)
    def _init():
        acc_ref[...] = jnp.zeros_like(acc_ref)

    n_chunks = tile_n // sub

    def accumulate(valid_rows):
        def body(s, carry):
            off = pl.multiple_of(s * sub, sub)
            xs = x_ref[pl.ds(off, sub), :].astype(jnp.float32)
            ys = y_ref[pl.ds(off, sub), :].astype(jnp.float32)
            # per-row weight: 4 if any element of the row of y is < threshold
            w = jnp.where(jnp.any(ys < THRESHOLD, axis=1, keepdims=True),
                          4.0, 1.0)                        # (sub, 1)
            contrib = w * jnp.abs(xs - ys)                 # (sub, D)
            if valid_rows is not None:
                # select (not multiply) => NaN-safe against garbage-padded rows
                rid = off + jax.lax.broadcasted_iota(jnp.int32, (sub, 1), 0)
                contrib = jnp.where(rid < valid_rows, contrib, 0.0)
            acc_ref[...] += contrib
            return carry

        jax.lax.fori_loop(0, n_chunks, body, 0)

    if needs_mask:
        t = c * steps_per_core + i                         # global tile index
        valid_rows = jnp.clip(n_rows - t * tile_n, 0, tile_n)

        @pl.when(valid_rows == tile_n)                     # full tile: fast path
        def _fast():
            accumulate(None)

        @pl.when(valid_rows < tile_n)                      # partial/phantom tile
        def _masked():
            accumulate(valid_rows)
    else:
        accumulate(None)

    @pl.when(i == steps_per_core - 1)
    def _finalize():
        o_ref[...] = jnp.sum(acc_ref[...], axis=0,
                             keepdims=True).reshape(o_ref.shape)


def sdf_loss(x, y, *, tile_n=None, num_cores=None):
    """Pallas implementation of sdf_loss.forward(x, y). Returns (1, D) f32."""
    n, d = x.shape
    assert y.shape == (n, d)

    in_itemsize = x.dtype.itemsize
    row_align = max(8, 32 // max(1, in_itemsize))  # 8 f32 / 16 bf16 / 32 int8

    vmem_cap, detected_cores = _tpu_hw()
    if num_cores is None:
        num_cores = detected_cores
    num_cores = max(1, int(num_cores))

    # ---- tile sizing (dtype- and generation-aware) --------------------------
    d_pad = _round_up(d, 128)
    if tile_n is None:
        # ~8 MiB per input tile with 128 MiB VMEM (v5e/v6e), ~4 MiB on 64 MiB
        # chips (v7x); per-step overhead (~0.35 us) then stays at a few
        # percent of the HBM streaming time per step.
        target_bytes = (8 << 20) if vmem_cap >= (96 << 20) else (4 << 20)
        want_rows = max(row_align, target_bytes // (d_pad * in_itemsize))
    else:
        want_rows = max(row_align, int(tile_n))

    # VMEM budget: 2 inputs x 2 pipeline buffers x tile + accumulator + slack.
    usable = max(4 << 20, int(vmem_cap * 0.55) - 256 * d_pad * 4 - (2 << 20))
    budget_rows = max(row_align, usable // (4 * d_pad * in_itemsize))
    # TODO(synk): for extremely wide D where even a few rows x 4 buffers would
    # overflow VMEM, add a second (parallel) grid axis tiling D in 128-lane
    # multiples.

    rows = max(row_align, min(want_rows, budget_rows, _round_up(n, row_align)))
    if rows >= 256:
        sub = 256                          # inner chunk / accumulator rows
        tile_n = (rows // sub) * sub
    else:
        sub = _round_up(rows, row_align)
        tile_n = sub

    # ---- grid layout ---------------------------------------------------------
    total_tiles = pl.cdiv(n, tile_n)
    num_cores = min(num_cores, total_tiles)
    steps_per_core = pl.cdiv(total_tiles, num_cores)
    phantom = num_cores * steps_per_core != total_tiles
    needs_mask = (n % tile_n != 0) or phantom

    if phantom:
        last_tile = total_tiles - 1

        def in_map(c, i):
            # clamp phantom steps onto the last real tile; their rows are
            # masked to zero inside the kernel.
            return (jnp.minimum(c * steps_per_core + i, last_tile), 0)
    else:
        def in_map(c, i):
            return (c * steps_per_core + i, 0)

    # ---- VMEM limit from the real (padded) footprint -------------------------
    tile_vmem = 4 * tile_n * d_pad * in_itemsize   # 2 inputs x double buffer
    acc_vmem = sub * d_pad * 4
    out_vmem = 2 * d_pad * 4
    vmem_limit = int(min(vmem_cap,
                         max(24 << 20,
                             tile_vmem + acc_vmem + out_vmem + (4 << 20))))

    kernel = functools.partial(
        _sdf_loss_kernel, n_rows=n, tile_n=tile_n, sub=sub,
        steps_per_core=steps_per_core, needs_mask=needs_mask)

    partials = pl.pallas_call(
        kernel,
        out_shape=jax.ShapeDtypeStruct((num_cores, 1, d), jnp.float32),
        grid_spec=pltpu.PrefetchScalarGridSpec(
            num_scalar_prefetch=0,
            grid=(num_cores, steps_per_core),
            in_specs=[
                pl.BlockSpec((tile_n, d), in_map),
                pl.BlockSpec((tile_n, d), in_map),
            ],
            out_specs=pl.BlockSpec((1, 1, d), lambda c, i: (c, 0, 0)),
            scratch_shapes=[pltpu.VMEM((sub, d), jnp.float32)],
        ),
        compiler_params=pltpu.CompilerParams(
            dimension_semantics=("parallel", "arbitrary"),
            vmem_limit_bytes=vmem_limit,
        ),
        cost_estimate=pl.CostEstimate(
            flops=4 * n * d,
            transcendentals=0,
            bytes_accessed=2 * n * d * in_itemsize + num_cores * d * 4,
        ),
    )(x, y)

    # cores -> 1 collapse and the 1/batch_size scale (tiny, done in XLA).
    return jnp.sum(partials, axis=0) / jnp.float32(n)


def _reference(x, y):
    """Pure-JAX reference mirroring the PyTorch forward exactly (f32)."""
    n = x.shape[0]
    w = jnp.where(jnp.any(y < THRESHOLD, axis=1, keepdims=True), 4.0, 1.0)
    return jnp.sum(w * jnp.abs(x - y), axis=0, keepdims=True) / n  # (1, D)


if __name__ == "__main__":
    key = jax.random.PRNGKey(0)
    kx, ky = jax.random.split(key)

    # N deliberately NOT a multiple of any tile size to exercise masking.
    N, D = 300, 128
    # y centered near zero so some rows trip the < 0.01 threshold (weight 4).
    x = jax.random.normal(kx, (N, D), dtype=jnp.float32) * 0.1
    y = jax.random.normal(ky, (N, D), dtype=jnp.float32) * 0.1 + 0.05

    ref = _reference(x, y)

    # 1) auto config: big tile, masked tail on the last step only.
    out_auto = jax.block_until_ready(sdf_loss(x, y))
    # 2) forced small tiles + forced 2-"core" grid: exercises the parallel
    #    axis, the clamped index map and phantom-tile masking (runs serially
    #    and stays correct on single-TensorCore chips).
    out_mc = jax.block_until_ready(sdf_loss(x, y, tile_n=64, num_cores=2))
    # 3) clean divide: unmasked fast path only (no mask code compiled).
    x2, y2 = x[:256], y[:256]
    out_fast = jax.block_until_ready(sdf_loss(x2, y2, tile_n=64))

    assert out_auto.shape == (1, D)
    assert jnp.allclose(out_auto, ref, atol=1e-6, rtol=1e-5), "auto-config mismatch"
    assert jnp.allclose(out_mc, ref, atol=1e-6, rtol=1e-5), "multi-core grid mismatch"
    assert jnp.allclose(out_fast, _reference(x2, y2), atol=1e-6, rtol=1e-5), \
        "fast-path mismatch"

    print("KERNEL_OK")
</pallas_src>

<mosaic_0001>
module attributes {stable_mosaic.version = 11 : i64} {
  func.func @_sdf_loss_kernel(%arg0: i32, %arg1: i32, %arg2: memref<256x128xf32, #tpu.memory_space<vmem>>, %arg3: memref<256x128xf32, #tpu.memory_space<vmem>>, %arg4: memref<1x1x128xf32, #tpu.memory_space<vmem>>, %arg5: memref<256x128xf32, #tpu.memory_space<vmem>>) attributes {dimension_semantics = [#tpu.dimension_semantics<parallel>, #tpu.dimension_semantics<arbitrary>], iteration_bounds = array<i64: 1, 2>, scalar_prefetch = 0 : i64, scratch_operands = 1 : i64, tpu.core_type = #tpu.core_type<tc>, window_params = [{transform_indices = @transform_0, window_bounds = array<i64: 256, 128>}, {transform_indices = @transform_1, window_bounds = array<i64: 256, 128>}, {transform_indices = @transform_2, window_bounds = array<i64: 1, 1, 128>}]} {
    %c0_i32 = arith.constant 0 : i32
    %0 = arith.cmpi eq, %arg1, %c0_i32 : i32
    %1 = arith.extui %0 : i1 to i32
    %c0_i32_0 = arith.constant 0 : i32
    %2 = arith.cmpi ne, %1, %c0_i32_0 : i32
    scf.if %2 {
      %cst = arith.constant 0.000000e+00 : f32
      %18 = vector.broadcast %cst : f32 to vector<256x128xf32>
      %c0 = arith.constant 0 : index
      %c0_8 = arith.constant 0 : index
      %19 = vector.load %arg5[%c0, %c0_8] : memref<256x128xf32, #tpu.memory_space<vmem>>, vector<256x128xf32>
      tpu.vector_store %arg5[%c0, %c0_8], %18 {strides = array<i32>} : memref<256x128xf32, #tpu.memory_space<vmem>>, vector<256x128xf32>,
    } else {
    }
    %c2_i32 = arith.constant 2 : i32
    %3 = arith.muli %arg0, %c2_i32 : i32
    %4 = arith.addi %3, %arg1 : i32
    %c256_i32 = arith.constant 256 : i32
    %5 = arith.muli %4, %c256_i32 : i32
    %c300_i32 = arith.constant 300 : i32
    %6 = arith.subi %c300_i32, %5 : i32
    %c0_i32_1 = arith.constant 0 : i32
    %c256_i32_2 = arith.constant 256 : i32
    %7 = arith.maxsi %c0_i32_1, %6 : i32
    %8 = arith.minsi %c256_i32_2, %7 : i32
    %c256_i32_3 = arith.constant 256 : i32
    %9 = arith.cmpi eq, %8, %c256_i32_3 : i32
    %10 = arith.extui %9 : i1 to i32
    %c0_i32_4 = arith.constant 0 : i32
    %11 = arith.cmpi ne, %10, %c0_i32_4 : i32
    scf.if %11 {
      %c0_i32_8 = arith.constant 0 : i32
      %c256_i32_9 = arith.constant 256 : i32
      %18 = arith.muli %c0_i32_8, %c256_i32_9 : i32
      %19 = tpu.assume_multiple %18, 256 : i32
      %20 = arith.index_cast %19 : i32 to index
      %c0 = arith.constant 0 : index
      %21 = vector.load %arg2[%20, %c0] : memref<256x128xf32, #tpu.memory_space<vmem>>, vector<256x128xf32>
      %22 = arith.index_cast %19 : i32 to index
      %c0_10 = arith.constant 0 : index
      %23 = vector.load %arg3[%22, %c0_10] : memref<256x128xf32, #tpu.memory_space<vmem>>, vector<256x128xf32>
      %cst = arith.constant 0.00999999977 : f32
      %24 = vector.broadcast %cst : f32 to vector<256x128xf32>
      %25 = arith.cmpf olt, %23, %24 : vector<256x128xf32>
      %cst_11 = arith.constant 1.000000e+00 : f32
      %cst_12 = arith.constant 0.000000e+00 : f32
      %26 = vector.broadcast %cst_11 : f32 to vector<256x128xf32>
      %27 = vector.broadcast %cst_12 : f32 to vector<256x128xf32>
      %28 = arith.select %25, %26, %27 : vector<256x128xi1>, vector<256x128xf32>
      %cst_13 = arith.constant dense<0xFF800000> : vector<256xf32>
      %29 = vector.multi_reduction <maximumf>, %28, %cst_13 [1] : vector<256x128xf32> to vector<256xf32>
      %cst_14 = arith.constant 0.000000e+00 : f32
      %30 = vector.broadcast %cst_14 : f32 to vector<256xf32>
      %31 = arith.cmpf ogt, %29, %30 : vector<256xf32>
      %32 = vector.shape_cast %31 : vector<256xi1> to vector<256x1xi1>
      %cst_15 = arith.constant 4.000000e+00 : f32
      %cst_16 = arith.constant 1.000000e+00 : f32
      %33 = vector.broadcast %cst_15 : f32 to vector<256x1xf32>
      %34 = vector.broadcast %cst_16 : f32 to vector<256x1xf32>
      %35 = arith.select %32, %33, %34 : vector<256x1xi1>, vector<256x1xf32>
      %36 = arith.subf %21, %23 : vector<256x128xf32>
      %37 = math.absf %36 : vector<256x128xf32>
      %38 = vector.broadcast %35 : vector<256x1xf32> to vector<256x128xf32>
      %39 = arith.mulf %38, %37 : vector<256x128xf32>
      %c0_17 = arith.constant 0 : index
      %c0_18 = arith.constant 0 : index
      %40 = vector.load %arg5[%c0_17, %c0_18] : memref<256x128xf32, #tpu.memory_space<vmem>>, vector<256x128xf32>
      %41 = arith.addf %40, %39 : vector<256x128xf32>
      %c0_19 = arith.constant 0 : index
      %c0_20 = arith.constant 0 : index
      %42 = vector.load %arg5[%c0_19, %c0_20] : memref<256x128xf32, #tpu.memory_space<vmem>>, vector<256x128xf32>
      tpu.vector_store %arg5[%c0_19, %c0_20], %41 {strides = array<i32>} : memref<256x128xf32, #tpu.memory_space<vmem>>, vector<256x128xf32>,
      %c1_i32_21 = arith.constant 1 : i32
    } else {
    }
    %c256_i32_5 = arith.constant 256 : i32
    %12 = arith.cmpi slt, %8, %c256_i32_5 : i32
    %13 = arith.extui %12 : i1 to i32
    %c0_i32_6 = arith.constant 0 : i32
    %14 = arith.cmpi ne, %13, %c0_i32_6 : i32
    scf.if %14 {
      %c0_i32_8 = arith.constant 0 : i32
      %c256_i32_9 = arith.constant 256 : i32
      %18 = arith.muli %c0_i32_8, %c256_i32_9 : i32
      %19 = tpu.assume_multiple %18, 256 : i32
      %20 = arith.index_cast %19 : i32 to index
      %c0 = arith.constant 0 : index
      %21 = vector.load %arg2[%20, %c0] : memref<256x128xf32, #tpu.memory_space<vmem>>, vector<256x128xf32>
      %22 = arith.index_cast %19 : i32 to index
      %c0_10 = arith.constant 0 : index
      %23 = vector.load %arg3[%22, %c0_10] : memref<256x128xf32, #tpu.memory_space<vmem>>, vector<256x128xf32>
      %cst = arith.constant 0.00999999977 : f32
      %24 = vector.broadcast %cst : f32 to vector<256x128xf32>
      %25 = arith.cmpf olt, %23, %24 : vector<256x128xf32>
      %cst_11 = arith.constant 1.000000e+00 : f32
      %cst_12 = arith.constant 0.000000e+00 : f32
      %26 = vector.broadcast %cst_11 : f32 to vector<256x128xf32>
      %27 = vector.broadcast %cst_12 : f32 to vector<256x128xf32>
      %28 = arith.select %25, %26, %27 : vector<256x128xi1>, vector<256x128xf32>
      %cst_13 = arith.constant dense<0xFF800000> : vector<256xf32>
      %29 = vector.multi_reduction <maximumf>, %28, %cst_13 [1] : vector<256x128xf32> to vector<256xf32>
      %cst_14 = arith.constant 0.000000e+00 : f32
      %30 = vector.broadcast %cst_14 : f32 to vector<256xf32>
      %31 = arith.cmpf ogt, %29, %30 : vector<256xf32>
      %32 = vector.shape_cast %31 : vector<256xi1> to vector<256x1xi1>
      %cst_15 = arith.constant 4.000000e+00 : f32
      %cst_16 = arith.constant 1.000000e+00 : f32
      %33 = vector.broadcast %cst_15 : f32 to vector<256x1xf32>
      %34 = vector.broadcast %cst_16 : f32 to vector<256x1xf32>
      %35 = arith.select %32, %33, %34 : vector<256x1xi1>, vector<256x1xf32>
      %36 = arith.subf %21, %23 : vector<256x128xf32>
      %37 = math.absf %36 : vector<256x128xf32>
      %38 = vector.broadcast %35 : vector<256x1xf32> to vector<256x128xf32>
      %39 = arith.mulf %38, %37 : vector<256x128xf32>
      %40 = tpu.iota {dimensions = array<i32: 0>} : vector<256x1xi32>
      %41 = vector.broadcast %19 : i32 to vector<256x1xi32>
      %42 = arith.addi %41, %40 : vector<256x1xi32>
      %43 = vector.broadcast %8 : i32 to vector<256x1xi32>
      %44 = arith.cmpi slt, %42, %43 : vector<256x1xi32>
      %cst_17 = arith.constant 0.000000e+00 : f32
      %45 = vector.shape_cast %44 : vector<256x1xi1> to vector<256x1xi1>
      %46 = vector.broadcast %45 : vector<256x1xi1> to vector<256x128xi1>
      %47 = vector.broadcast %cst_17 : f32 to vector<256x128xf32>
      %48 = arith.select %46, %39, %47 : vector<256x128xi1>, vector<256x128xf32>
      %c0_18 = arith.constant 0 : index
      %c0_19 = arith.constant 0 : index
      %49 = vector.load %arg5[%c0_18, %c0_19] : memref<256x128xf32, #tpu.memory_space<vmem>>, vector<256x128xf32>
      %50 = arith.addf %49, %48 : vector<256x128xf32>
      %c0_20 = arith.constant 0 : index
      %c0_21 = arith.constant 0 : index
      %51 = vector.load %arg5[%c0_20, %c0_21] : memref<256x128xf32, #tpu.memory_space<vmem>>, vector<256x128xf32>
      tpu.vector_store %arg5[%c0_20, %c0_21], %50 {strides = array<i32>} : memref<256x128xf32, #tpu.memory_space<vmem>>, vector<256x128xf32>,
      %c1_i32_22 = arith.constant 1 : i32
    } else {
    }
    %c1_i32 = arith.constant 1 : i32
    %15 = arith.cmpi eq, %arg1, %c1_i32 : i32
    %16 = arith.extui %15 : i1 to i32
    %c0_i32_7 = arith.constant 0 : i32
    %17 = arith.cmpi ne, %16, %c0_i32_7 : i32
    scf.if %17 {
      %c0 = arith.constant 0 : index
      %c0_8 = arith.constant 0 : index
      %18 = vector.load %arg5[%c0, %c0_8] : memref<256x128xf32, #tpu.memory_space<vmem>>, vector<256x128xf32>
      %cst = arith.constant dense<0.000000e+00> : vector<128xf32>
      %19 = vector.multi_reduction <add>, %18, %cst [0] : vector<256x128xf32> to vector<128xf32>
      %20 = vector.shape_cast %19 : vector<128xf32> to vector<1x128xf32>
      %21 = vector.shape_cast %20 : vector<1x128xf32> to vector<1x1x128xf32>
      %c0_9 = arith.constant 0 : index
      %c0_10 = arith.constant 0 : index
      %c0_11 = arith.constant 0 : index
      %22 = vector.load %arg4[%c0_9, %c0_10, %c0_11] : memref<1x1x128xf32, #tpu.memory_space<vmem>>, vector<1x1x128xf32>
      tpu.vector_store %arg4[%c0_9, %c0_10, %c0_11], %21 {strides = array<i32>} : memref<1x1x128xf32, #tpu.memory_space<vmem>>, vector<1x1x128xf32>,
    } else {
    }
    return
  }
  func.func @transform_0(%arg0: i32, %arg1: i32) -> (i32, i32) {
    %c2_i32 = arith.constant 2 : i32
    %0 = arith.muli %arg0, %c2_i32 : i32
    %1 = arith.addi %0, %arg1 : i32
    %c0_i32 = arith.constant 0 : i32
    %c0_i32_0 = arith.constant 0 : i32
    return %1, %c0_i32 : i32, i32
  }
  func.func @transform_1(%arg0: i32, %arg1: i32) -> (i32, i32) {
    %c2_i32 = arith.constant 2 : i32
    %0 = arith.muli %arg0, %c2_i32 : i32
    %1 = arith.addi %0, %arg1 : i32
    %c0_i32 = arith.constant 0 : i32
    %c0_i32_0 = arith.constant 0 : i32
    return %1, %c0_i32 : i32, i32
  }
  func.func @transform_2(%arg0: i32, %arg1: i32) -> (i32, i32, i32) {
    %c0_i32 = arith.constant 0 : i32
    %c0_i32_0 = arith.constant 0 : i32
    %c0_i32_1 = arith.constant 0 : i32
    return %arg0, %c0_i32, %c0_i32_0 : i32, i32, i32
  }
}

</mosaic_0001>

<llo_original>
// kernel: tpu_custom_call.1
$region0: #{tpu_custom_call.1}
  #allocation0 [shape = 'u32[]', space=smem, size = 0x4, offset = 0x4, fixed_abs, tag = 'smem constant byte address 0x4 - core index']
  #allocation1 [shape = 'u32[144,128]{1,0:T(1,128)}', space=vmem, size = 0x12000, scoped, tag = 'internal scratch']
  #allocation2 [shape = 'f32[256,128]{1,0:T(8,128)}', space=vmem, size = 0x20000, scoped, tag = 'scratch operand']
  %s0 = inlined_call_operand.hbm [shape: f32[300,128], index: 0, kind: input, shape index: {}]
  %s1 = inlined_call_operand.hbm [shape: f32[300,128], index: 1, kind: input, shape index: {}]
  %s2 = inlined_call_operand.hbm [shape: f32[1,1,128], index: 2, kind: output, shape index: {}]
  %s3 = sld [smem:[#allocation0]]
  $region65: #{tpu_custom_call.1} parent=0
    _
  %s5 = ssub.s32 1, %s3
  %s6 = scalar_select 0, %s5, %s3
  $region1: #{tpu_custom_call.1} parent=0
    #allocation3 [shape = 'u8[262144]{0}', space=vmem, size = 0x40000, scoped, tag = 'input window, operand 0']
    #allocation4 [shape = 's32[2]{0}', space=sflag, size = 0x8, scoped, tag = 'scoped memory for tpu_custom_call.1']
    #allocation5 [shape = 's32[2]{0}', space=sflag, size = 0x8, scoped, tag = 'scoped memory for tpu_custom_call.1']
    #allocation6 [shape = 'u8[262144]{0}', space=vmem, size = 0x40000, scoped, tag = 'input window, operand 1']
    #allocation7 [shape = 's32[2]{0}', space=sflag, size = 0x8, scoped, tag = 'scoped memory for tpu_custom_call.1']
    #allocation8 [shape = 'u8[512]{0}', space=vmem, size = 0x400, scoped, tag = 'output window, operand 0, single buffered']
    %7 = vsyncpa [#allocation4], 0
    %s8 = scalar_lea.sflag [#allocation4], 1
    %9 = vsyncpa %s8, 0
    %10 = vsyncpa [#allocation7], 0
    %s11 = scalar_lea.sflag [#allocation7], 1
    %12 = vsyncpa %s11, 0
    %13 = vsyncpa [#allocation5], 0
    loop: start=0, step=1, limit=4
    $region2: #{tpu_custom_call.1} parent=1 // loop_pre_header
      _
    $region3: #{tpu_custom_call.1} parent=1 // loop_header
      %s15 = sphi 0, %s19
      %p16 = scmp.ge.s32.totalorder %s15, 4
      %s22 = sphi 0, %s34
      %s23 = sphi 0, %s30
      %s24 = sphi 0, %s22
      %s25 = sphi 0, %s23
      %s26 = sphi 0, %s24
      %s27 = sphi 0, %s25
      %s41 = sphi 0, %s43
      %s44 = sphi 0, %s41
      %s45 = sphi 0, %s44
      %s61 = sphi 0, %s45
      %s71 = sphi 0, %s73
      %s74 = sphi 0, %s71
      %s75 = sphi 0, %s74
      %s91 = sphi 0, %s75
      %s97 = sphi 0, %s99
      %s100 = sphi 0, %s97
      %s101 = sphi 0, %s100
      %s117 = sphi 0, %s101
    $region4: #{tpu_custom_call.1} parent=1 // loop_header_branch
      %18 = sbr.rel (%p16) target = $region8
    $region5: #{tpu_custom_call.1} parent=1 // loop_body
      %s20 = ssub.s32 %s15, 1
      %s21 = ssub.s32 %s15, 2
      %s28 = sadd.s32 1, %s23
      %p29 = scmp.ge.s32.totalorder %s28, 2
      %s30 = scalar_select %p29, 0, %s28
      %s31 = sadd.s32 1, %s22
      %s32 = scalar_select %p29, %s31, %s22
      %p33 = scmp.ge.s32.totalorder %s32, 1
      %s34 = scalar_select %p33, 0, %s32
      %s35 = smul.u32 %s22, 2
      %s36 = sadd.s32 %s35, %s23
      %s37 = smul.u32 %s34, 2
      %s38 = sadd.s32 %s37, %s30
      %s39 = ssub.s32 %s36, %s38
      %p40 = scmp.eq.s32.totalorder %s39, 0
      %s42 = sadd.s32 %s41, 1
      %s43 = scalar_select %p40, %s41, %s42
      %p46 = pneg %p40
      %p47 = scmp.eq.s32.totalorder %s15, 1
      %p48 = por %p46, %p47
      %p49 = scmp.ne.s32.totalorder %s41, %s44
      %p50 = scmp.eq.s32.totalorder %s15, 0
      %p51 = por %p49, %p50
      %p52 = scmp.ne.s32.totalorder %s41, %s44
      %p53 = scmp.eq.s32.totalorder %s20, 1
      %p54 = por %p52, %p53
      %p55 = scmp.ne.s32.totalorder %s44, %s45
      %p56 = scmp.eq.s32.totalorder %s20, 0
      %p57 = por %p55, %p56
      %p58 = scmp.ne.s32.totalorder %s44, %s45
      %p59 = scmp.eq.s32.totalorder %s21, 1
      %p60 = por %p58, %p59
      %p62 = scmp.ne.s32.totalorder %s45, %s61
      %p63 = scmp.eq.s32.totalorder %s21, 0
      %p64 = por %p62, %p63
      %s65 = smul.u32 %s22, 2
      %s66 = sadd.s32 %s65, %s23
      %s67 = smul.u32 %s34, 2
      %s68 = sadd.s32 %s67, %s30
      %s69 = ssub.s32 %s66, %s68
      %p70 = scmp.eq.s32.totalorder %s69, 0
      %s72 = sadd.s32 %s71, 1
      %s73 = scalar_select %p70, %s71, %s72
      %p76 = pneg %p70
      %p77 = scmp.eq.s32.totalorder %s15, 1
      %p78 = por %p76, %p77
      %p79 = scmp.ne.s32.totalorder %s71, %s74
      %p80 = scmp.eq.s32.totalorder %s15, 0
      %p81 = por %p79, %p80
      %p82 = scmp.ne.s32.totalorder %s71, %s74
      %p83 = scmp.eq.s32.totalorder %s20, 1
      %p84 = por %p82, %p83
      %p85 = scmp.ne.s32.totalorder %s74, %s75
      %p86 = scmp.eq.s32.totalorder %s20, 0
      %p87 = por %p85, %p86
      %p88 = scmp.ne.s32.totalorder %s74, %s75
      %p89 = scmp.eq.s32.totalorder %s21, 1
      %p90 = por %p88, %p89
      %p92 = scmp.ne.s32.totalorder %s75, %s91
      %p93 = scmp.eq.s32.totalorder %s21, 0
      %p94 = por %p92, %p93
      %s95 = ssub.s32 %s22, %s34
      %p96 = scmp.eq.s32.totalorder %s95, 0
      %s98 = sadd.s32 %s97, 1
      %s99 = scalar_select %p96, %s97, %s98
      %p102 = pneg %p96
      %p103 = scmp.eq.s32.totalorder %s15, 1
      %p104 = por %p102, %p103
      %p105 = scmp.ne.s32.totalorder %s97, %s100
      %p106 = scmp.eq.s32.totalorder %s15, 0
      %p107 = por %p105, %p106
      %p108 = scmp.ne.s32.totalorder %s97, %s100
      %p109 = scmp.eq.s32.totalorder %s20, 1
      %p110 = por %p108, %p109
      %p111 = scmp.ne.s32.totalorder %s100, %s101
      %p112 = scmp.eq.s32.totalorder %s20, 0
      %p113 = por %p111, %p112
      %p114 = scmp.ne.s32.totalorder %s100, %s101
      %p115 = scmp.eq.s32.totalorder %s21, 1
      %p116 = por %p114, %p115
      %p118 = scmp.ne.s32.totalorder %s101, %s117
      %p119 = scmp.eq.s32.totalorder %s21, 0
      %p120 = por %p118, %p119
      %p121 = scmp.le.s32.totalorder 1, %s15
      %p122 = scmp.lt.s32.totalorder %s15, 3
      %p123 = pnand %p121, %p122
      %p124 = pneg %p123
      // Predicated region
      $region9: #{tpu_custom_call.1} parent=5 // pred_check
        _
      $region10: #{tpu_custom_call.1} parent=5 // pred_check_branch
        %126 = sbr.rel (%p123) target = $region12
      $region11: #{tpu_custom_call.1} parent=5 // pred_region
        %s127 = ssub.s32 %s15, 1
      $region12: #{tpu_custom_call.1} parent=5 // pred_fallthru
        _
      %p128 = scmp.lt.s32.totalorder %s15, 2
      // Predicated region
      $region13: #{tpu_custom_call.1} parent=5 // pred_check
        %p129 = pneg %p128
      $region14: #{tpu_custom_call.1} parent=5 // pred_check_branch
        %131 = sbr.rel (%p129) target = $region16
      $region15: #{tpu_custom_call.1} parent=5 // pred_region
        // Predicated region
        $region17: #{tpu_custom_call.1} parent=15 // pred_check
          %p132 = pneg %p51
        $region18: #{tpu_custom_call.1} parent=15 // pred_check_branch
          %134 = sbr.rel (%p132) target = $region20
        $region19: #{tpu_custom_call.1} parent=15 // pred_region
          %s135 = sand.u32 %s41, 1
          %s136 = scalar_lea.sflag [#allocation4], %s135
          %s137 = sand.u32 %s41, 1
          %s138 = smul.addr %s137, 256
          %s139 = scalar_lea.vmem [#allocation3], %s138
          %s140 = smul.u32 %s22, 2
          %s141 = sadd.s32 %s140, %s23
          %s142 = smul.u32 32, %s141
          %s143 = ssub.s32 38, %s142
          %p144 = scmp.lt.s32.totalorder %s143, 32
          %s145 = scalar_select %p144, %s143, 32
          %s146 = smul.u32 128, %s145
          %s148 = ssub.s32 4096, %s146
          %149 = vsyncadd %s136, %s148
          %p150 = scmp.ne.s32.totalorder 0, %s146
          %s151 = smul.addr %s142, 128
          %s152 = scalar_lea.hbm %s0, %s151
          %s153 = smul.u32 8, %s145
          %s154 = sshll.u32 %s139, 4
          %s155 = int_to_ptr.vmem [resolvable:$true] %s154
          %s156 = sshll.u32 %s153, 4
          %160 = dma.hbm_to_vmem [thread:$0]  (%p150), %s152, %s156, %s155, %s136, 128, 128, 8
        $region20: #{tpu_custom_call.1} parent=15 // pred_fallthru
          _
        // Predicated region
        $region21: #{tpu_custom_call.1} parent=15 // pred_check
          %p161 = pneg %p81
        $region22: #{tpu_custom_call.1} parent=15 // pred_check_branch
          %163 = sbr.rel (%p161) target = $region24
        $region23: #{tpu_custom_call.1} parent=15 // pred_region
          %s164 = sand.u32 %s71, 1
          %s165 = scalar_lea.sflag [#allocation7], %s164
          %s166 = sand.u32 %s71, 1
          %s167 = smul.addr %s166, 256
          %s168 = scalar_lea.vmem [#allocation6], %s167
          %s169 = smul.u32 %s22, 2
          %s170 = sadd.s32 %s169, %s23
          %s171 = smul.u32 32, %s170
          %s172 = ssub.s32 38, %s171
          %p173 = scmp.lt.s32.totalorder %s172, 32
          %s174 = scalar_select %p173, %s172, 32
          %s175 = smul.u32 128, %s174
          %s177 = ssub.s32 4096, %s175
          %178 = vsyncadd %s165, %s177
          %p179 = scmp.ne.s32.totalorder 0, %s175
          %s180 = smul.addr %s171, 128
          %s181 = scalar_lea.hbm %s1, %s180
          %s182 = smul.u32 8, %s174
          %s183 = sshll.u32 %s168, 4
          %s184 = int_to_ptr.vmem [resolvable:$true] %s183
          %s185 = sshll.u32 %s182, 4
          %189 = dma.hbm_to_vmem [thread:$0]  (%p179), %s181, %s185, %s184, %s165, 128, 128, 8
        $region24: #{tpu_custom_call.1} parent=15 // pred_fallthru
          _
      $region16: #{tpu_custom_call.1} parent=5 // pred_fallthru
        _
      %p190 = scmp.le.s32.totalorder 1, %s15
      %p191 = scmp.lt.s32.totalorder %s15, 3
      %p192 = pnand %p190, %p191
      %p193 = pneg %p192
      // Predicated region
      $region25: #{tpu_custom_call.1} parent=5 // pred_check
        _
      $region26: #{tpu_custom_call.1} parent=5 // pred_check_branch
        %195 = sbr.rel (%p192) target = $region28
      $region27: #{tpu_custom_call.1} parent=5 // pred_region
        %s196 = ssub.s32 %s15, 1
        %s197 = sand.u32 %s44, 1
        %s198 = scalar_lea.sflag [#allocation4], %s197
        %s199 = sand.u32 %s44, 1
        %s200 = smul.addr %s199, 256
        %s201 = scalar_lea.vmem [#allocation3], %s200
        // Predicated region
        $region29: #{tpu_custom_call.1} parent=27 // pred_check
          %p202 = pneg %p57
        $region30: #{tpu_custom_call.1} parent=27 // pred_check_branch
          %204 = sbr.rel (%p202) target = $region32
        $region31: #{tpu_custom_call.1} parent=27 // pred_region
          %205 = dma.done %s198, 4096
        $region32: #{tpu_custom_call.1} parent=27 // pred_fallthru
          _
        %s206 = sand.u32 %s74, 1
        %s207 = scalar_lea.sflag [#allocation7], %s206
        %s208 = sand.u32 %s74, 1
        %s209 = smul.addr %s208, 256
        %s210 = scalar_lea.vmem [#allocation6], %s209
        // Predicated region
        $region33: #{tpu_custom_call.1} parent=27 // pred_check
          %p211 = pneg %p87
        $region34: #{tpu_custom_call.1} parent=27 // pred_check_branch
          %213 = sbr.rel (%p211) target = $region36
        $region35: #{tpu_custom_call.1} parent=27 // pred_region
          %214 = dma.done %s207, 4096
        $region36: #{tpu_custom_call.1} parent=27 // pred_fallthru
          _
        %s215 = sand.u32 %s44, 1
        %s216 = scalar_lea.sflag [#allocation4], %s215
        %s217 = sand.u32 %s44, 1
        %s218 = smul.addr %s217, 256
        %s219 = scalar_lea.vmem [#allocation3], %s218
        %p220 = pneg %p57
        %p221 = pneg %p54
        %s222 = sand.u32 %s74, 1
        %s223 = scalar_lea.sflag [#allocation7], %s222
        %s224 = sand.u32 %s74, 1
        %s225 = smul.addr %s224, 256
        %s226 = scalar_lea.vmem [#allocation6], %s225
        %p227 = pneg %p87
        %p228 = pneg %p84
        %p229 = pneg %p113
        %p230 = pneg %p110
        %s231 = smul.u32 %s24, 2
        %s232 = sadd.s32 %s231, %s25
        %s233 = smul.u32 32, %s232
        %s234 = ssub.s32 38, %s233
        %p235 = scmp.lt.s32.totalorder %s234, 32
        %s236 = scalar_select %p235, %s234, 32
        %s237 = smul.u32 128, %s236
        %s238 = smul.u32 %s24, 2
        %s239 = sadd.s32 %s238, %s25
        %s240 = smul.u32 32, %s239
        %s241 = ssub.s32 38, %s240
        %p242 = scmp.lt.s32.totalorder %s241, 32
        %s243 = scalar_select %p242, %s241, 32
        %s244 = smul.u32 128, %s243
        %p245 = scmp.eq.s32.totalorder %s25, 0
        // Predicated region
        $region37: #{tpu_custom_call.1} parent=27 // pred_check
          %p246 = pneg %p245
        $region38: #{tpu_custom_call.1} parent=27 // pred_check_branch
          %248 = sbr.rel (%p246) target = $region40
        $region39: #{tpu_custom_call.1} parent=27 // pred_region
          %249 = vst [vmem:[#allocation2] sm:$0xff] 0.0
          %250 = vst [vmem:[#allocation2 + $0x8] sm:$0xff] 0.0
          %251 = vst [vmem:[#allocation2 + $0x10] sm:$0xff] 0.0
          %252 = vst [vmem:[#allocation2 + $0x18] sm:$0xff] 0.0
          %253 = vst [vmem:[#allocation2 + $0x20] sm:$0xff] 0.0
          %254 = vst [vmem:[#allocation2 + $0x28] sm:$0xff] 0.0
          %255 = vst [vmem:[#allocation2 + $0x30] sm:$0xff] 0.0
          %256 = vst [vmem:[#allocation2 + $0x38] sm:$0xff] 0.0
          %257 = vst [vmem:[#allocation2 + $0x40] sm:$0xff] 0.0
          %258 = vst [vmem:[#allocation2 + $0x48] sm:$0xff] 0.0
          %259 = vst [vmem:[#allocation2 + $0x50] sm:$0xff] 0.0
          %260 = vst [vmem:[#allocation2 + $0x58] sm:$0xff] 0.0
          %261 = vst [vmem:[#allocation2 + $0x60] sm:$0xff] 0.0
          %262 = vst [vmem:[#allocation2 + $0x68] sm:$0xff] 0.0
          %263 = vst [vmem:[#allocation2 + $0x70] sm:$0xff] 0.0
          %264 = vst [vmem:[#allocation2 + $0x78] sm:$0xff] 0.0
          %265 = vst [vmem:[#allocation2 + $0x80] sm:$0xff] 0.0
          %266 = vst [vmem:[#allocation2 + $0x88] sm:$0xff] 0.0
          %267 = vst [vmem:[#allocation2 + $0x90] sm:$0xff] 0.0
          %268 = vst [vmem:[#allocation2 + $0x98] sm:$0xff] 0.0
          %269 = vst [vmem:[#allocation2 + $0xa0] sm:$0xff] 0.0
          %270 = vst [vmem:[#allocation2 + $0xa8] sm:$0xff] 0.0
          %271 = vst [vmem:[#allocation2 + $0xb0] sm:$0xff] 0.0
          %272 = vst [vmem:[#allocation2 + $0xb8] sm:$0xff] 0.0
          %273 = vst [vmem:[#allocation2 + $0xc0] sm:$0xff] 0.0
          %274 = vst [vmem:[#allocation2 + $0xc8] sm:$0xff] 0.0
          %275 = vst [vmem:[#allocation2 + $0xd0] sm:$0xff] 0.0
          %276 = vst [vmem:[#allocation2 + $0xd8] sm:$0xff] 0.0
          %277 = vst [vmem:[#allocation2 + $0xe0] sm:$0xff] 0.0
          %278 = vst [vmem:[#allocation2 + $0xe8] sm:$0xff] 0.0
          %279 = vst [vmem:[#allocation2 + $0xf0] sm:$0xff] 0.0
          %280 = vst [vmem:[#allocation2 + $0xf8] sm:$0xff] 0.0
        $region40: #{tpu_custom_call.1} parent=27 // pred_fallthru
          _
        %s281 = smul.u32 %s24, 2
        %s282 = sadd.s32 %s281, %s25
        %s283 = smul.u32 %s282, 256
        %s284 = ssub.s32 300, %s283
        %p285 = scmp.gt.s32.totalorder %s284, 0
        %s286 = scalar_select %p285, %s284, 0
        %p287 = scmp.lt.s32.totalorder %s286, 256
        %s288 = scalar_select %p287, %s286, 256
        %p289 = scmp.eq.s32.totalorder %s288, 256
        // Predicated region
        $region41: #{tpu_custom_call.1} parent=27 // pred_check
          %p290 = pneg %p289
        $region42: #{tpu_custom_call.1} parent=27 // pred_check_branch
          %292 = sbr.rel (%p290) target = $region44
        $region43: #{tpu_custom_call.1} parent=27 // pred_region
          %v293 = vld [vmem:[%s201] sm:$0xff]
          %v294 = vld [vmem:[%s201 + $0x8] sm:$0xff]
          %v295 = vld [vmem:[%s201 + $0x10] sm:$0xff]
          %v296 = vld [vmem:[%s201 + $0x18] sm:$0xff]
          %v297 = vld [vmem:[%s201 + $0x20] sm:$0xff]
          %v298 = vld [vmem:[%s201 + $0x28] sm:$0xff]
          %v299 = vld [vmem:[%s201 + $0x30] sm:$0xff]
          %v300 = vld [vmem:[%s201 + $0x38] sm:$0xff]
          %v301 = vld [vmem:[%s201 + $0x40] sm:$0xff]
          %v302 = vld [vmem:[%s201 + $0x48] sm:$0xff]
          %v303 = vld [vmem:[%s201 + $0x50] sm:$0xff]
          %v304 = vld [vmem:[%s201 + $0x58] sm:$0xff]
          %v305 = vld [vmem:[%s201 + $0x60] sm:$0xff]
          %v306 = vld [vmem:[%s201 + $0x68] sm:$0xff]
          %v307 = vld [vmem:[%s201 + $0x70] sm:$0xff]
          %v308 = vld [vmem:[%s201 + $0x78] sm:$0xff]
          %v309 = vld [vmem:[%s201 + $0x80] sm:$0xff]
          %v310 = vld [vmem:[%s201 + $0x88] sm:$0xff]
          %v311 = vld [vmem:[%s201 + $0x90] sm:$0xff]
          %v312 = vld [vmem:[%s201 + $0x98] sm:$0xff]
          %v313 = vld [vmem:[%s201 + $0xa0] sm:$0xff]
          %v314 = vld [vmem:[%s201 + $0xa8] sm:$0xff]
          %v315 = vld [vmem:[%s201 + $0xb0] sm:$0xff]
          %v316 = vld [vmem:[%s201 + $0xb8] sm:$0xff]
          %v317 = vld [vmem:[%s201 + $0xc0] sm:$0xff]
          %v318 = vld [vmem:[%s201 + $0xc8] sm:$0xff]
          %v319 = vld [vmem:[%s201 + $0xd0] sm:$0xff]
          %v320 = vld [vmem:[%s201 + $0xd8] sm:$0xff]
          %v321 = vld [vmem:[%s201 + $0xe0] sm:$0xff]
          %v322 = vld [vmem:[%s201 + $0xe8] sm:$0xff]
          %v323 = vld [vmem:[%s201 + $0xf0] sm:$0xff]
          %v324 = vld [vmem:[%s201 + $0xf8] sm:$0xff]
          %v325 = vld [vmem:[%s210] sm:$0xff]
          %v326 = vld [vmem:[%s210 + $0x8] sm:$0xff]
          %v327 = vld [vmem:[%s210 + $0x10] sm:$0xff]
          %v328 = vld [vmem:[%s210 + $0x18] sm:$0xff]
          %v329 = vld [vmem:[%s210 + $0x20] sm:$0xff]
          %v330 = vld [vmem:[%s210 + $0x28] sm:$0xff]
          %v331 = vld [vmem:[%s210 + $0x30] sm:$0xff]
          %v332 = vld [vmem:[%s210 + $0x38] sm:$0xff]
          %v333 = vld [vmem:[%s210 + $0x40] sm:$0xff]
          %v334 = vld [vmem:[%s210 + $0x48] sm:$0xff]
          %v335 = vld [vmem:[%s210 + $0x50] sm:$0xff]
          %v336 = vld [vmem:[%s210 + $0x58] sm:$0xff]
          %v337 = vld [vmem:[%s210 + $0x60] sm:$0xff]
          %v338 = vld [vmem:[%s210 + $0x68] sm:$0xff]
          %v339 = vld [vmem:[%s210 + $0x70] sm:$0xff]
          %v340 = vld [vmem:[%s210 + $0x78] sm:$0xff]
          %v341 = vld [vmem:[%s210 + $0x80] sm:$0xff]
          %v342 = vld [vmem:[%s210 + $0x88] sm:$0xff]
          %v343 = vld [vmem:[%s210 + $0x90] sm:$0xff]
          %v344 = vld [vmem:[%s210 + $0x98] sm:$0xff]
          %v345 = vld [vmem:[%s210 + $0xa0] sm:$0xff]
          %v346 = vld [vmem:[%s210 + $0xa8] sm:$0xff]
          %v347 = vld [vmem:[%s210 + $0xb0] sm:$0xff]
          %v348 = vld [vmem:[%s210 + $0xb8] sm:$0xff]
          %v349 = vld [vmem:[%s210 + $0xc0] sm:$0xff]
          %v350 = vld [vmem:[%s210 + $0xc8] sm:$0xff]
          %v351 = vld [vmem:[%s210 + $0xd0] sm:$0xff]
          %v352 = vld [vmem:[%s210 + $0xd8] sm:$0xff]
          %v353 = vld [vmem:[%s210 + $0xe0] sm:$0xff]
          %v354 = vld [vmem:[%s210 + $0xe8] sm:$0xff]
          %v355 = vld [vmem:[%s210 + $0xf0] sm:$0xff]
          %v356 = vld [vmem:[%s210 + $0xf8] sm:$0xff]
          %vm357 = vcmp.lt.f32.partialorder %v325, 0.01
          %vm358 = vcmp.lt.f32.partialorder %v326, 0.01
          %vm359 = vcmp.lt.f32.partialorder %v327, 0.01
          %vm360 = vcmp.lt.f32.partialorder %v328, 0.01
          %vm361 = vcmp.lt.f32.partialorder %v329, 0.01
          %vm362 = vcmp.lt.f32.partialorder %v330, 0.01
          %vm363 = vcmp.lt.f32.partialorder %v331, 0.01
          %vm364 = vcmp.lt.f32.partialorder %v332, 0.01
          %vm365 = vcmp.lt.f32.partialorder %v333, 0.01
          %vm366 = vcmp.lt.f32.partialorder %v334, 0.01
          %vm367 = vcmp.lt.f32.partialorder %v335, 0.01
          %vm368 = vcmp.lt.f32.partialorder %v336, 0.01
          %vm369 = vcmp.lt.f32.partialorder %v337, 0.01
          %vm370 = vcmp.lt.f32.partialorder %v338, 0.01
          %vm371 = vcmp.lt.f32.partialorder %v339, 0.01
          %vm372 = vcmp.lt.f32.partialorder %v340, 0.01
          %vm373 = vcmp.lt.f32.partialorder %v341, 0.01
          %vm374 = vcmp.lt.f32.partialorder %v342, 0.01
          %vm375 = vcmp.lt.f32.partialorder %v343, 0.01
          %vm376 = vcmp.lt.f32.partialorder %v344, 0.01
          %vm377 = vcmp.lt.f32.partialorder %v345, 0.01
          %vm378 = vcmp.lt.f32.partialorder %v346, 0.01
          %vm379 = vcmp.lt.f32.partialorder %v347, 0.01
          %vm380 = vcmp.lt.f32.partialorder %v348, 0.01
          %vm381 = vcmp.lt.f32.partialorder %v349, 0.01
          %vm382 = vcmp.lt.f32.partialorder %v350, 0.01
          %vm383 = vcmp.lt.f32.partialorder %v351, 0.01
          %vm384 = vcmp.lt.f32.partialorder %v352, 0.01
          %vm385 = vcmp.lt.f32.partialorder %v353, 0.01
          %vm386 = vcmp.lt.f32.partialorder %v354, 0.01
          %vm387 = vcmp.lt.f32.partialorder %v355, 0.01
          %vm388 = vcmp.lt.f32.partialorder %v356, 0.01
          %v389 = vsel %vm357, 1.0, 0.0
          %v390 = vsel %vm358, 1.0, 0.0
          %v391 = vsel %vm359, 1.0, 0.0
          %v392 = vsel %vm360, 1.0, 0.0
          %v393 = vsel %vm361, 1.0, 0.0
          %v394 = vsel %vm362, 1.0, 0.0
          %v395 = vsel %vm363, 1.0, 0.0
          %v396 = vsel %vm364, 1.0, 0.0
          %v397 = vsel %vm365, 1.0, 0.0
          %v398 = vsel %vm366, 1.0, 0.0
          %v399 = vsel %vm367, 1.0, 0.0
          %v400 = vsel %vm368, 1.0, 0.0
          %v401 = vsel %vm369, 1.0, 0.0
          %v402 = vsel %vm370, 1.0, 0.0
          %v403 = vsel %vm371, 1.0, 0.0
          %v404 = vsel %vm372, 1.0, 0.0
          %v405 = vsel %vm373, 1.0, 0.0
          %v406 = vsel %vm374, 1.0, 0.0
          %v407 = vsel %vm375, 1.0, 0.0
          %v408 = vsel %vm376, 1.0, 0.0
          %v409 = vsel %vm377, 1.0, 0.0
          %v410 = vsel %vm378, 1.0, 0.0
          %v411 = vsel %vm379, 1.0, 0.0
          %v412 = vsel %vm380, 1.0, 0.0
          %v413 = vsel %vm381, 1.0, 0.0
          %v414 = vsel %vm382, 1.0, 0.0
          %v415 = vsel %vm383, 1.0, 0.0
          %v416 = vsel %vm384, 1.0, 0.0
          %v417 = vsel %vm385, 1.0, 0.0
          %v418 = vsel %vm386, 1.0, 0.0
          %v419 = vsel %vm387, 1.0, 0.0
          %v420 = vsel %vm388, 1.0, 0.0
          %421 = vmax.xlane.f32.xlu0 %v389
          %v422 = vpop.xlane.xlu0 %421
          %423 = vmax.xlane.f32.xlu0 %v390
          %v424 = vpop.xlane.xlu0 %423
          %425 = vmax.xlane.f32.xlu0 %v391
          %v426 = vpop.xlane.xlu0 %425
          %427 = vmax.xlane.f32.xlu0 %v392
          %v428 = vpop.xlane.xlu0 %427
          %429 = vmax.xlane.f32.xlu0 %v393
          %v430 = vpop.xlane.xlu0 %429
          %431 = vmax.xlane.f32.xlu0 %v394
          %v432 = vpop.xlane.xlu0 %431
          %433 = vmax.xlane.f32.xlu0 %v395
          %v434 = vpop.xlane.xlu0 %433
          %435 = vmax.xlane.f32.xlu0 %v396
          %v436 = vpop.xlane.xlu0 %435
          %437 = vmax.xlane.f32.xlu0 %v397
          %v438 = vpop.xlane.xlu0 %437
          %439 = vmax.xlane.f32.xlu0 %v398
          %v440 = vpop.xlane.xlu0 %439
          %441 = vmax.xlane.f32.xlu0 %v399
          %v442 = vpop.xlane.xlu0 %441
          %443 = vmax.xlane.f32.xlu0 %v400
          %v444 = vpop.xlane.xlu0 %443
          %445 = vmax.xlane.f32.xlu0 %v401
          %v446 = vpop.xlane.xlu0 %445
          %447 = vmax.xlane.f32.xlu0 %v402
          %v448 = vpop.xlane.xlu0 %447
          %449 = vmax.xlane.f32.xlu0 %v403
          %v450 = vpop.xlane.xlu0 %449
          %451 = vmax.xlane.f32.xlu0 %v404
          %v452 = vpop.xlane.xlu0 %451
          %453 = vmax.xlane.f32.xlu0 %v405
          %v454 = vpop.xlane.xlu0 %453
          %455 = vmax.xlane.f32.xlu0 %v406
          %v456 = vpop.xlane.xlu0 %455
          %457 = vmax.xlane.f32.xlu0 %v407
          %v458 = vpop.xlane.xlu0 %457
          %459 = vmax.xlane.f32.xlu0 %v408
          %v460 = vpop.xlane.xlu0 %459
          %461 = vmax.xlane.f32.xlu0 %v409
          %v462 = vpop.xlane.xlu0 %461
          %463 = vmax.xlane.f32.xlu0 %v410
          %v464 = vpop.xlane.xlu0 %463
          %465 = vmax.xlane.f32.xlu0 %v411
          %v466 = vpop.xlane.xlu0 %465
          %467 = vmax.xlane.f32.xlu0 %v412
          %v468 = vpop.xlane.xlu0 %467
          %469 = vmax.xlane.f32.xlu0 %v413
          %v470 = vpop.xlane.xlu0 %469
          %471 = vmax.xlane.f32.xlu0 %v414
          %v472 = vpop.xlane.xlu0 %471
          %473 = vmax.xlane.f32.xlu0 %v415
          %v474 = vpop.xlane.xlu0 %473
          %475 = vmax.xlane.f32.xlu0 %v416
          %v476 = vpop.xlane.xlu0 %475
          %477 = vmax.xlane.f32.xlu0 %v417
          %v478 = vpop.xlane.xlu0 %477
          %479 = vmax.xlane.f32.xlu0 %v418
          %v480 = vpop.xlane.xlu0 %479
          %481 = vmax.xlane.f32.xlu0 %v419
          %v482 = vpop.xlane.xlu0 %481
          %483 = vmax.xlane.f32.xlu0 %v420
          %v484 = vpop.xlane.xlu0 %483
          %vm485 = vcmp.gt.f32.partialorder %v422, 0.0
          %vm486 = vcmp.gt.f32.partialorder %v424, 0.0
          %vm487 = vcmp.gt.f32.partialorder %v426, 0.0
          %vm488 = vcmp.gt.f32.partialorder %v428, 0.0
          %vm489 = vcmp.gt.f32.partialorder %v430, 0.0
          %vm490 = vcmp.gt.f32.partialorder %v432, 0.0
          %vm491 = vcmp.gt.f32.partialorder %v434, 0.0
          %vm492 = vcmp.gt.f32.partialorder %v436, 0.0
          %vm493 = vcmp.gt.f32.partialorder %v438, 0.0
          %vm494 = vcmp.gt.f32.partialorder %v440, 0.0
          %vm495 = vcmp.gt.f32.partialorder %v442, 0.0
          %vm496 = vcmp.gt.f32.partialorder %v444, 0.0
          %vm497 = vcmp.gt.f32.partialorder %v446, 0.0
          %vm498 = vcmp.gt.f32.partialorder %v448, 0.0
          %vm499 = vcmp.gt.f32.partialorder %v450, 0.0
          %vm500 = vcmp.gt.f32.partialorder %v452, 0.0
          %vm501 = vcmp.gt.f32.partialorder %v454, 0.0
          %vm502 = vcmp.gt.f32.partialorder %v456, 0.0
          %vm503 = vcmp.gt.f32.partialorder %v458, 0.0
          %vm504 = vcmp.gt.f32.partialorder %v460, 0.0
          %vm505 = vcmp.gt.f32.partialorder %v462, 0.0
          %vm506 = vcmp.gt.f32.partialorder %v464, 0.0
          %vm507 = vcmp.gt.f32.partialorder %v466, 0.0
          %vm508 = vcmp.gt.f32.partialorder %v468, 0.0
          %vm509 = vcmp.gt.f32.partialorder %v470, 0.0
          %vm510 = vcmp.gt.f32.partialorder %v472, 0.0
          %vm511 = vcmp.gt.f32.partialorder %v474, 0.0
          %vm512 = vcmp.gt.f32.partialorder %v476, 0.0
          %vm513 = vcmp.gt.f32.partialorder %v478, 0.0
          %vm514 = vcmp.gt.f32.partialorder %v480, 0.0
          %vm515 = vcmp.gt.f32.partialorder %v482, 0.0
          %vm516 = vcmp.gt.f32.partialorder %v484, 0.0
          %v517 = vsel %vm485, 4.0, 1.0
          %v518 = vsel %vm486, 4.0, 1.0
          %v519 = vsel %vm487, 4.0, 1.0
          %v520 = vsel %vm488, 4.0, 1.0
          %v521 = vsel %vm489, 4.0, 1.0
          %v522 = vsel %vm490, 4.0, 1.0
          %v523 = vsel %vm491, 4.0, 1.0
          %v524 = vsel %vm492, 4.0, 1.0
          %v525 = vsel %vm493, 4.0, 1.0
          %v526 = vsel %vm494, 4.0, 1.0
          %v527 = vsel %vm495, 4.0, 1.0
          %v528 = vsel %vm496, 4.0, 1.0
          %v529 = vsel %vm497, 4.0, 1.0
          %v530 = vsel %vm498, 4.0, 1.0
          %v531 = vsel %vm499, 4.0, 1.0
          %v532 = vsel %vm500, 4.0, 1.0
          %v533 = vsel %vm501, 4.0, 1.0
          %v534 = vsel %vm502, 4.0, 1.0
          %v535 = vsel %vm503, 4.0, 1.0
          %v536 = vsel %vm504, 4.0, 1.0
          %v537 = vsel %vm505, 4.0, 1.0
          %v538 = vsel %vm506, 4.0, 1.0
          %v539 = vsel %vm507, 4.0, 1.0
          %v540 = vsel %vm508, 4.0, 1.0
          %v541 = vsel %vm509, 4.0, 1.0
          %v542 = vsel %vm510, 4.0, 1.0
          %v543 = vsel %vm511, 4.0, 1.0
          %v544 = vsel %vm512, 4.0, 1.0
          %v545 = vsel %vm513, 4.0, 1.0
          %v546 = vsel %vm514, 4.0, 1.0
          %v547 = vsel %vm515, 4.0, 1.0
          %v548 = vsel %vm516, 4.0, 1.0
          %v549 = vsub.f32 %v293, %v325
          %v550 = vsub.f32 %v294, %v326
          %v551 = vsub.f32 %v295, %v327
          %v552 = vsub.f32 %v296, %v328
          %v553 = vsub.f32 %v297, %v329
          %v554 = vsub.f32 %v298, %v330
          %v555 = vsub.f32 %v299, %v331
          %v556 = vsub.f32 %v300, %v332
          %v557 = vsub.f32 %v301, %v333
          %v558 = vsub.f32 %v302, %v334
          %v559 = vsub.f32 %v303, %v335
          %v560 = vsub.f32 %v304, %v336
          %v561 = vsub.f32 %v305, %v337
          %v562 = vsub.f32 %v306, %v338
          %v563 = vsub.f32 %v307, %v339
          %v564 = vsub.f32 %v308, %v340
          %v565 = vsub.f32 %v309, %v341
          %v566 = vsub.f32 %v310, %v342
          %v567 = vsub.f32 %v311, %v343
          %v568 = vsub.f32 %v312, %v344
          %v569 = vsub.f32 %v313, %v345
          %v570 = vsub.f32 %v314, %v346
          %v571 = vsub.f32 %v315, %v347
          %v572 = vsub.f32 %v316, %v348
          %v573 = vsub.f32 %v317, %v349
          %v574 = vsub.f32 %v318, %v350
          %v575 = vsub.f32 %v319, %v351
          %v576 = vsub.f32 %v320, %v352
          %v577 = vsub.f32 %v321, %v353
          %v578 = vsub.f32 %v322, %v354
          %v579 = vsub.f32 %v323, %v355
          %v580 = vsub.f32 %v324, %v356
          %v581 = vand.u32 2147483647, %v549
          %v582 = vand.u32 2147483647, %v550
          %v583 = vand.u32 2147483647, %v551
          %v584 = vand.u32 2147483647, %v552
          %v585 = vand.u32 2147483647, %v553
          %v586 = vand.u32 2147483647, %v554
          %v587 = vand.u32 2147483647, %v555
          %v588 = vand.u32 2147483647, %v556
          %v589 = vand.u32 2147483647, %v557
          %v590 = vand.u32 2147483647, %v558
          %v591 = vand.u32 2147483647, %v559
          %v592 = vand.u32 2147483647, %v560
          %v593 = vand.u32 2147483647, %v561
          %v594 = vand.u32 2147483647, %v562
          %v595 = vand.u32 2147483647, %v563
          %v596 = vand.u32 2147483647, %v564
          %v597 = vand.u32 2147483647, %v565
          %v598 = vand.u32 2147483647, %v566
          %v599 = vand.u32 2147483647, %v567
          %v600 = vand.u32 2147483647, %v568
          %v601 = vand.u32 2147483647, %v569
          %v602 = vand.u32 2147483647, %v570
          %v603 = vand.u32 2147483647, %v571
          %v604 = vand.u32 2147483647, %v572
          %v605 = vand.u32 2147483647, %v573
          %v606 = vand.u32 2147483647, %v574
          %v607 = vand.u32 2147483647, %v575
          %v608 = vand.u32 2147483647, %v576
          %v609 = vand.u32 2147483647, %v577
          %v610 = vand.u32 2147483647, %v578
          %v611 = vand.u32 2147483647, %v579
          %v612 = vand.u32 2147483647, %v580
          %v613 = vmul.f32 %v517, %v581
          %v614 = vmul.f32 %v518, %v582
          %v615 = vmul.f32 %v519, %v583
          %v616 = vmul.f32 %v520, %v584
          %v617 = vmul.f32 %v521, %v585
          %v618 = vmul.f32 %v522, %v586
          %v619 = vmul.f32 %v523, %v587
          %v620 = vmul.f32 %v524, %v588
          %v621 = vmul.f32 %v525, %v589
          %v622 = vmul.f32 %v526, %v590
          %v623 = vmul.f32 %v527, %v591
          %v624 = vmul.f32 %v528, %v592
          %v625 = vmul.f32 %v529, %v593
          %v626 = vmul.f32 %v530, %v594
          %v627 = vmul.f32 %v531, %v595
          %v628 = vmul.f32 %v532, %v596
          %v629 = vmul.f32 %v533, %v597
          %v630 = vmul.f32 %v534, %v598
          %v631 = vmul.f32 %v535, %v599
          %v632 = vmul.f32 %v536, %v600
          %v633 = vmul.f32 %v537, %v601
          %v634 = vmul.f32 %v538, %v602
          %v635 = vmul.f32 %v539, %v603
          %v636 = vmul.f32 %v540, %v604
          %v637 = vmul.f32 %v541, %v605
          %v638 = vmul.f32 %v542, %v606
          %v639 = vmul.f32 %v543, %v607
          %v640 = vmul.f32 %v544, %v608
          %v641 = vmul.f32 %v545, %v609
          %v642 = vmul.f32 %v546, %v610
          %v643 = vmul.f32 %v547, %v611
          %v644 = vmul.f32 %v548, %v612
          %v645 = vld [vmem:[#allocation2] sm:$0xff]
          %v646 = vld [vmem:[#allocation2 + $0x8] sm:$0xff]
          %v647 = vld [vmem:[#allocation2 + $0x10] sm:$0xff]
          %v648 = vld [vmem:[#allocation2 + $0x18] sm:$0xff]
          %v649 = vld [vmem:[#allocation2 + $0x20] sm:$0xff]
          %v650 = vld [vmem:[#allocation2 + $0x28] sm:$0xff]
          %v651 = vld [vmem:[#allocation2 + $0x30] sm:$0xff]
          %v652 = vld [vmem:[#allocation2 + $0x38] sm:$0xff]
          %v653 = vld [vmem:[#allocation2 + $0x40] sm:$0xff]
          %v654 = vld [vmem:[#allocation2 + $0x48] sm:$0xff]
          %v655 = vld [vmem:[#allocation2 + $0x50] sm:$0xff]
          %v656 = vld [vmem:[#allocation2 + $0x58] sm:$0xff]
          %v657 = vld [vmem:[#allocation2 + $0x60] sm:$0xff]
          %v658 = vld [vmem:[#allocation2 + $0x68] sm:$0xff]
          %v659 = vld [vmem:[#allocation2 + $0x70] sm:$0xff]
          %v660 = vld [vmem:[#allocation2 + $0x78] sm:$0xff]
          %v661 = vld [vmem:[#allocation2 + $0x80] sm:$0xff]
          %v662 = vld [vmem:[#allocation2 + $0x88] sm:$0xff]
          %v663 = vld [vmem:[#allocation2 + $0x90] sm:$0xff]
          %v664 = vld [vmem:[#allocation2 + $0x98] sm:$0xff]
          %v665 = vld [vmem:[#allocation2 + $0xa0] sm:$0xff]
          %v666 = vld [vmem:[#allocation2 + $0xa8] sm:$0xff]
          %v667 = vld [vmem:[#allocation2 + $0xb0] sm:$0xff]
          %v668 = vld [vmem:[#allocation2 + $0xb8] sm:$0xff]
          %v669 = vld [vmem:[#allocation2 + $0xc0] sm:$0xff]
          %v670 = vld [vmem:[#allocation2 + $0xc8] sm:$0xff]
          %v671 = vld [vmem:[#allocation2 + $0xd0] sm:$0xff]
          %v672 = vld [vmem:[#allocation2 + $0xd8] sm:$0xff]
          %v673 = vld [vmem:[#allocation2 + $0xe0] sm:$0xff]
          %v674 = vld [vmem:[#allocation2 + $0xe8] sm:$0xff]
          %v675 = vld [vmem:[#allocation2 + $0xf0] sm:$0xff]
          %v676 = vld [vmem:[#allocation2 + $0xf8] sm:$0xff]
          %v677 = vadd.f32 %v645, %v613
          %v678 = vadd.f32 %v646, %v614
          %v679 = vadd.f32 %v647, %v615
          %v680 = vadd.f32 %v648, %v616
          %v681 = vadd.f32 %v649, %v617
          %v682 = vadd.f32 %v650, %v618
          %v683 = vadd.f32 %v651, %v619
          %v684 = vadd.f32 %v652, %v620
          %v685 = vadd.f32 %v653, %v621
          %v686 = vadd.f32 %v654, %v622
          %v687 = vadd.f32 %v655, %v623
          %v688 = vadd.f32 %v656, %v624
          %v689 = vadd.f32 %v657, %v625
          %v690 = vadd.f32 %v658, %v626
          %v691 = vadd.f32 %v659, %v627
          %v692 = vadd.f32 %v660, %v628
          %v693 = vadd.f32 %v661, %v629
          %v694 = vadd.f32 %v662, %v630
          %v695 = vadd.f32 %v663, %v631
          %v696 = vadd.f32 %v664, %v632
          %v697 = vadd.f32 %v665, %v633
          %v698 = vadd.f32 %v666, %v634
          %v699 = vadd.f32 %v667, %v635
          %v700 = vadd.f32 %v668, %v636
          %v701 = vadd.f32 %v669, %v637
          %v702 = vadd.f32 %v670, %v638
          %v703 = vadd.f32 %v671, %v639
          %v704 = vadd.f32 %v672, %v640
          %v705 = vadd.f32 %v673, %v641
          %v706 = vadd.f32 %v674, %v642
          %v707 = vadd.f32 %v675, %v643
          %v708 = vadd.f32 %v676, %v644
          %709 = vst [vmem:[#allocation2] sm:$0xff] %v677
          %710 = vst [vmem:[#allocation2 + $0x8] sm:$0xff] %v678
          %711 = vst [vmem:[#allocation2 + $0x10] sm:$0xff] %v679
          %712 = vst [vmem:[#allocation2 + $0x18] sm:$0xff] %v680
          %713 = vst [vmem:[#allocation2 + $0x20] sm:$0xff] %v681
          %714 = vst [vmem:[#allocation2 + $0x28] sm:$0xff] %v682
          %715 = vst [vmem:[#allocation2 + $0x30] sm:$0xff] %v683
          %716 = vst [vmem:[#allocation2 + $0x38] sm:$0xff] %v684
          %717 = vst [vmem:[#allocation2 + $0x40] sm:$0xff] %v685
          %718 = vst [vmem:[#allocation2 + $0x48] sm:$0xff] %v686
          %719 = vst [vmem:[#allocation2 + $0x50] sm:$0xff] %v687
          %720 = vst [vmem:[#allocation2 + $0x58] sm:$0xff] %v688
          %721 = vst [vmem:[#allocation2 + $0x60] sm:$0xff] %v689
          %722 = vst [vmem:[#allocation2 + $0x68] sm:$0xff] %v690
          %723 = vst [vmem:[#allocation2 + $0x70] sm:$0xff] %v691
          %724 = vst [vmem:[#allocation2 + $0x78] sm:$0xff] %v692
          %725 = vst [vmem:[#allocation2 + $0x80] sm:$0xff] %v693
          %726 = vst [vmem:[#allocation2 + $0x88] sm:$0xff] %v694
          %727 = vst [vmem:[#allocation2 + $0x90] sm:$0xff] %v695
          %728 = vst [vmem:[#allocation2 + $0x98] sm:$0xff] %v696
          %729 = vst [vmem:[#allocation2 + $0xa0] sm:$0xff] %v697
          %730 = vst [vmem:[#allocation2 + $0xa8] sm:$0xff] %v698
          %731 = vst [vmem:[#allocation2 + $0xb0] sm:$0xff] %v699
          %732 = vst [vmem:[#allocation2 + $0xb8] sm:$0xff] %v700
          %733 = vst [vmem:[#allocation2 + $0xc0] sm:$0xff] %v701
          %734 = vst [vmem:[#allocation2 + $0xc8] sm:$0xff] %v702
          %735 = vst [vmem:[#allocation2 + $0xd0] sm:$0xff] %v703
          %736 = vst [vmem:[#allocation2 + $0xd8] sm:$0xff] %v704
          %737 = vst [vmem:[#allocation2 + $0xe0] sm:$0xff] %v705
          %738 = vst [vmem:[#allocation2 + $0xe8] sm:$0xff] %v706
          %739 = vst [vmem:[#allocation2 + $0xf0] sm:$0xff] %v707
          %740 = vst [vmem:[#allocation2 + $0xf8] sm:$0xff] %v708
        $region44: #{tpu_custom_call.1} parent=27 // pred_fallthru
          _
        %p741 = scmp.lt.s32.totalorder %s288, 256
        // Predicated region
        $region45: #{tpu_custom_call.1} parent=27 // pred_check
          %p742 = pneg %p741
        $region46: #{tpu_custom_call.1} parent=27 // pred_check_branch
          %744 = sbr.rel (%p742) target = $region48
        $region47: #{tpu_custom_call.1} parent=27 // pred_region
          %v745 = vld [vmem:[%s201] sm:$0xff]
          %v746 = vld [vmem:[%s201 + $0x8] sm:$0xff]
          %v747 = vld [vmem:[%s201 + $0x10] sm:$0xff]
          %v748 = vld [vmem:[%s201 + $0x18] sm:$0xff]
          %v749 = vld [vmem:[%s201 + $0x20] sm:$0xff]
          %v750 = vld [vmem:[%s201 + $0x28] sm:$0xff]
          %v751 = vld [vmem:[%s201 + $0x30] sm:$0xff]
          %v752 = vld [vmem:[%s201 + $0x38] sm:$0xff]
          %v753 = vld [vmem:[%s201 + $0x40] sm:$0xff]
          %v754 = vld [vmem:[%s201 + $0x48] sm:$0xff]
          %v755 = vld [vmem:[%s201 + $0x50] sm:$0xff]
          %v756 = vld [vmem:[%s201 + $0x58] sm:$0xff]
          %v757 = vld [vmem:[%s201 + $0x60] sm:$0xff]
          %v758 = vld [vmem:[%s201 + $0x68] sm:$0xff]
          %v759 = vld [vmem:[%s201 + $0x70] sm:$0xff]
          %v760 = vld [vmem:[%s201 + $0x78] sm:$0xff]
          %v761 = vld [vmem:[%s201 + $0x80] sm:$0xff]
          %v762 = vld [vmem:[%s201 + $0x88] sm:$0xff]
          %v763 = vld [vmem:[%s201 + $0x90] sm:$0xff]
          %v764 = vld [vmem:[%s201 + $0x98] sm:$0xff]
          %v765 = vld [vmem:[%s201 + $0xa0] sm:$0xff]
          %v766 = vld [vmem:[%s201 + $0xa8] sm:$0xff]
          %v767 = vld [vmem:[%s201 + $0xb0] sm:$0xff]
          %v768 = vld [vmem:[%s201 + $0xb8] sm:$0xff]
          %v769 = vld [vmem:[%s201 + $0xc0] sm:$0xff]
          %v770 = vld [vmem:[%s201 + $0xc8] sm:$0xff]
          %v771 = vld [vmem:[%s201 + $0xd0] sm:$0xff]
          %v772 = vld [vmem:[%s201 + $0xd8] sm:$0xff]
          %v773 = vld [vmem:[%s201 + $0xe0] sm:$0xff]
          %v774 = vld [vmem:[%s201 + $0xe8] sm:$0xff]
          %v775 = vld [vmem:[%s201 + $0xf0] sm:$0xff]
          %v776 = vld [vmem:[%s201 + $0xf8] sm:$0xff]
          %v777 = vld [vmem:[%s210] sm:$0xff]
          %v778 = vld [vmem:[%s210 + $0x8] sm:$0xff]
          %v779 = vld [vmem:[%s210 + $0x10] sm:$0xff]
          %v780 = vld [vmem:[%s210 + $0x18] sm:$0xff]
          %v781 = vld [vmem:[%s210 + $0x20] sm:$0xff]
          %v782 = vld [vmem:[%s210 + $0x28] sm:$0xff]
          %v783 = vld [vmem:[%s210 + $0x30] sm:$0xff]
          %v784 = vld [vmem:[%s210 + $0x38] sm:$0xff]
          %v785 = vld [vmem:[%s210 + $0x40] sm:$0xff]
          %v786 = vld [vmem:[%s210 + $0x48] sm:$0xff]
          %v787 = vld [vmem:[%s210 + $0x50] sm:$0xff]
          %v788 = vld [vmem:[%s210 + $0x58] sm:$0xff]
          %v789 = vld [vmem:[%s210 + $0x60] sm:$0xff]
          %v790 = vld [vmem:[%s210 + $0x68] sm:$0xff]
          %v791 = vld [vmem:[%s210 + $0x70] sm:$0xff]
          %v792 = vld [vmem:[%s210 + $0x78] sm:$0xff]
          %v793 = vld [vmem:[%s210 + $0x80] sm:$0xff]
          %v794 = vld [vmem:[%s210 + $0x88] sm:$0xff]
          %v795 = vld [vmem:[%s210 + $0x90] sm:$0xff]
          %v796 = vld [vmem:[%s210 + $0x98] sm:$0xff]
          %v797 = vld [vmem:[%s210 + $0xa0] sm:$0xff]
          %v798 = vld [vmem:[%s210 + $0xa8] sm:$0xff]
          %v799 = vld [vmem:[%s210 + $0xb0] sm:$0xff]
          %v800 = vld [vmem:[%s210 + $0xb8] sm:$0xff]
          %v801 = vld [vmem:[%s210 + $0xc0] sm:$0xff]
          %v802 = vld [vmem:[%s210 + $0xc8] sm:$0xff]
          %v803 = vld [vmem:[%s210 + $0xd0] sm:$0xff]
          %v804 = vld [vmem:[%s210 + $0xd8] sm:$0xff]
          %v805 = vld [vmem:[%s210 + $0xe0] sm:$0xff]
          %v806 = vld [vmem:[%s210 + $0xe8] sm:$0xff]
          %v807 = vld [vmem:[%s210 + $0xf0] sm:$0xff]
          %v808 = vld [vmem:[%s210 + $0xf8] sm:$0xff]
          %vm809 = vcmp.lt.f32.partialorder %v777, 0.01
          %vm810 = vcmp.lt.f32.partialorder %v778, 0.01
          %vm811 = vcmp.lt.f32.partialorder %v779, 0.01
          %vm812 = vcmp.lt.f32.partialorder %v780, 0.01
          %vm813 = vcmp.lt.f32.partialorder %v781, 0.01
          %vm814 = vcmp.lt.f32.partialorder %v782, 0.01
          %vm815 = vcmp.lt.f32.partialorder %v783, 0.01
          %vm816 = vcmp.lt.f32.partialorder %v784, 0.01
          %vm817 = vcmp.lt.f32.partialorder %v785, 0.01
          %vm818 = vcmp.lt.f32.partialorder %v786, 0.01
          %vm819 = vcmp.lt.f32.partialorder %v787, 0.01
          %vm820 = vcmp.lt.f32.partialorder %v788, 0.01
          %vm821 = vcmp.lt.f32.partialorder %v789, 0.01
          %vm822 = vcmp.lt.f32.partialorder %v790, 0.01
          %vm823 = vcmp.lt.f32.partialorder %v791, 0.01
          %vm824 = vcmp.lt.f32.partialorder %v792, 0.01
          %vm825 = vcmp.lt.f32.partialorder %v793, 0.01
          %vm826 = vcmp.lt.f32.partialorder %v794, 0.01
          %vm827 = vcmp.lt.f32.partialorder %v795, 0.01
          %vm828 = vcmp.lt.f32.partialorder %v796, 0.01
          %vm829 = vcmp.lt.f32.partialorder %v797, 0.01
          %vm830 = vcmp.lt.f32.partialorder %v798, 0.01
          %vm831 = vcmp.lt.f32.partialorder %v799, 0.01
          %vm832 = vcmp.lt.f32.partialorder %v800, 0.01
          %vm833 = vcmp.lt.f32.partialorder %v801, 0.01
          %vm834 = vcmp.lt.f32.partialorder %v802, 0.01
          %vm835 = vcmp.lt.f32.partialorder %v803, 0.01
          %vm836 = vcmp.lt.f32.partialorder %v804, 0.01
          %vm837 = vcmp.lt.f32.partialorder %v805, 0.01
          %vm838 = vcmp.lt.f32.partialorder %v806, 0.01
          %vm839 = vcmp.lt.f32.partialorder %v807, 0.01
          %vm840 = vcmp.lt.f32.partialorder %v808, 0.01
          %v841 = vsel %vm809, 1.0, 0.0
          %v842 = vsel %vm810, 1.0, 0.0
          %v843 = vsel %vm811, 1.0, 0.0
          %v844 = vsel %vm812, 1.0, 0.0
          %v845 = vsel %vm813, 1.0, 0.0
          %v846 = vsel %vm814, 1.0, 0.0
          %v847 = vsel %vm815, 1.0, 0.0
          %v848 = vsel %vm816, 1.0, 0.0
          %v849 = vsel %vm817, 1.0, 0.0
          %v850 = vsel %vm818, 1.0, 0.0
          %v851 = vsel %vm819, 1.0, 0.0
          %v852 = vsel %vm820, 1.0, 0.0
          %v853 = vsel %vm821, 1.0, 0.0
          %v854 = vsel %vm822, 1.0, 0.0
          %v855 = vsel %vm823, 1.0, 0.0
          %v856 = vsel %vm824, 1.0, 0.0
          %v857 = vsel %vm825, 1.0, 0.0
          %v858 = vsel %vm826, 1.0, 0.0
          %v859 = vsel %vm827, 1.0, 0.0
          %v860 = vsel %vm828, 1.0, 0.0
          %v861 = vsel %vm829, 1.0, 0.0
          %v862 = vsel %vm830, 1.0, 0.0
          %v863 = vsel %vm831, 1.0, 0.0
          %v864 = vsel %vm832, 1.0, 0.0
          %v865 = vsel %vm833, 1.0, 0.0
          %v866 = vsel %vm834, 1.0, 0.0
          %v867 = vsel %vm835, 1.0, 0.0
          %v868 = vsel %vm836, 1.0, 0.0
          %v869 = vsel %vm837, 1.0, 0.0
          %v870 = vsel %vm838, 1.0, 0.0
          %v871 = vsel %vm839, 1.0, 0.0
          %v872 = vsel %vm840, 1.0, 0.0
          %873 = vmax.xlane.f32.xlu0 %v841
          %v874 = vpop.xlane.xlu0 %873
          %875 = vmax.xlane.f32.xlu0 %v842
          %v876 = vpop.xlane.xlu0 %875
          %877 = vmax.xlane.f32.xlu0 %v843
          %v878 = vpop.xlane.xlu0 %877
          %879 = vmax.xlane.f32.xlu0 %v844
          %v880 = vpop.xlane.xlu0 %879
          %881 = vmax.xlane.f32.xlu0 %v845
          %v882 = vpop.xlane.xlu0 %881
          %883 = vmax.xlane.f32.xlu0 %v846
          %v884 = vpop.xlane.xlu0 %883
          %885 = vmax.xlane.f32.xlu0 %v847
          %v886 = vpop.xlane.xlu0 %885
          %887 = vmax.xlane.f32.xlu0 %v848
          %v888 = vpop.xlane.xlu0 %887
          %889 = vmax.xlane.f32.xlu0 %v849
          %v890 = vpop.xlane.xlu0 %889
          %891 = vmax.xlane.f32.xlu0 %v850
          %v892 = vpop.xlane.xlu0 %891
          %893 = vmax.xlane.f32.xlu0 %v851
          %v894 = vpop.xlane.xlu0 %893
          %895 = vmax.xlane.f32.xlu0 %v852
          %v896 = vpop.xlane.xlu0 %895
          %897 = vmax.xlane.f32.xlu0 %v853
          %v898 = vpop.xlane.xlu0 %897
          %899 = vmax.xlane.f32.xlu0 %v854
          %v900 = vpop.xlane.xlu0 %899
          %901 = vmax.xlane.f32.xlu0 %v855
          %v902 = vpop.xlane.xlu0 %901
          %903 = vmax.xlane.f32.xlu0 %v856
          %v904 = vpop.xlane.xlu0 %903
          %905 = vmax.xlane.f32.xlu0 %v857
          %v906 = vpop.xlane.xlu0 %905
          %907 = vmax.xlane.f32.xlu0 %v858
          %v908 = vpop.xlane.xlu0 %907
          %909 = vmax.xlane.f32.xlu0 %v859
          %v910 = vpop.xlane.xlu0 %909
          %911 = vmax.xlane.f32.xlu0 %v860
          %v912 = vpop.xlane.xlu0 %911
          %913 = vmax.xlane.f32.xlu0 %v861
          %v914 = vpop.xlane.xlu0 %913
          %915 = vmax.xlane.f32.xlu0 %v862
          %v916 = vpop.xlane.xlu0 %915
          %917 = vmax.xlane.f32.xlu0 %v863
          %v918 = vpop.xlane.xlu0 %917
          %919 = vmax.xlane.f32.xlu0 %v864
          %v920 = vpop.xlane.xlu0 %919
          %921 = vmax.xlane.f32.xlu0 %v865
          %v922 = vpop.xlane.xlu0 %921
          %923 = vmax.xlane.f32.xlu0 %v866
          %v924 = vpop.xlane.xlu0 %923
          %925 = vmax.xlane.f32.xlu0 %v867
          %v926 = vpop.xlane.xlu0 %925
          %927 = vmax.xlane.f32.xlu0 %v868
          %v928 = vpop.xlane.xlu0 %927
          %929 = vmax.xlane.f32.xlu0 %v869
          %v930 = vpop.xlane.xlu0 %929
          %931 = vmax.xlane.f32.xlu0 %v870
          %v932 = vpop.xlane.xlu0 %931
          %933 = vmax.xlane.f32.xlu0 %v871
          %v934 = vpop.xlane.xlu0 %933
          %935 = vmax.xlane.f32.xlu0 %v872
          %v936 = vpop.xlane.xlu0 %935
          %vm937 = vcmp.gt.f32.partialorder %v874, 0.0
          %vm938 = vcmp.gt.f32.partialorder %v876, 0.0
          %vm939 = vcmp.gt.f32.partialorder %v878, 0.0
          %vm940 = vcmp.gt.f32.partialorder %v880, 0.0
          %vm941 = vcmp.gt.f32.partialorder %v882, 0.0
          %vm942 = vcmp.gt.f32.partialorder %v884, 0.0
          %vm943 = vcmp.gt.f32.partialorder %v886, 0.0
          %vm944 = vcmp.gt.f32.partialorder %v888, 0.0
          %vm945 = vcmp.gt.f32.partialorder %v890, 0.0
          %vm946 = vcmp.gt.f32.partialorder %v892, 0.0
          %vm947 = vcmp.gt.f32.partialorder %v894, 0.0
          %vm948 = vcmp.gt.f32.partialorder %v896, 0.0
          %vm949 = vcmp.gt.f32.partialorder %v898, 0.0
          %vm950 = vcmp.gt.f32.partialorder %v900, 0.0
          %vm951 = vcmp.gt.f32.partialorder %v902, 0.0
          %vm952 = vcmp.gt.f32.partialorder %v904, 0.0
          %vm953 = vcmp.gt.f32.partialorder %v906, 0.0
          %vm954 = vcmp.gt.f32.partialorder %v908, 0.0
          %vm955 = vcmp.gt.f32.partialorder %v910, 0.0
          %vm956 = vcmp.gt.f32.partialorder %v912, 0.0
          %vm957 = vcmp.gt.f32.partialorder %v914, 0.0
          %vm958 = vcmp.gt.f32.partialorder %v916, 0.0
          %vm959 = vcmp.gt.f32.partialorder %v918, 0.0
          %vm960 = vcmp.gt.f32.partialorder %v920, 0.0
          %vm961 = vcmp.gt.f32.partialorder %v922, 0.0
          %vm962 = vcmp.gt.f32.partialorder %v924, 0.0
          %vm963 = vcmp.gt.f32.partialorder %v926, 0.0
          %vm964 = vcmp.gt.f32.partialorder %v928, 0.0
          %vm965 = vcmp.gt.f32.partialorder %v930, 0.0
          %vm966 = vcmp.gt.f32.partialorder %v932, 0.0
          %vm967 = vcmp.gt.f32.partialorder %v934, 0.0
          %vm968 = vcmp.gt.f32.partialorder %v936, 0.0
          %v969 = vsel %vm937, 4.0, 1.0
          %v970 = vsel %vm938, 4.0, 1.0
          %v971 = vsel %vm939, 4.0, 1.0
          %v972 = vsel %vm940, 4.0, 1.0
          %v973 = vsel %vm941, 4.0, 1.0
          %v974 = vsel %vm942, 4.0, 1.0
          %v975 = vsel %vm943, 4.0, 1.0
          %v976 = vsel %vm944, 4.0, 1.0
          %v977 = vsel %vm945, 4.0, 1.0
          %v978 = vsel %vm946, 4.0, 1.0
          %v979 = vsel %vm947, 4.0, 1.0
          %v980 = vsel %vm948, 4.0, 1.0
          %v981 = vsel %vm949, 4.0, 1.0
          %v982 = vsel %vm950, 4.0, 1.0
          %v983 = vsel %vm951, 4.0, 1.0
          %v984 = vsel %vm952, 4.0, 1.0
          %v985 = vsel %vm953, 4.0, 1.0
          %v986 = vsel %vm954, 4.0, 1.0
          %v987 = vsel %vm955, 4.0, 1.0
          %v988 = vsel %vm956, 4.0, 1.0
          %v989 = vsel %vm957, 4.0, 1.0
          %v990 = vsel %vm958, 4.0, 1.0
          %v991 = vsel %vm959, 4.0, 1.0
          %v992 = vsel %vm960, 4.0, 1.0
          %v993 = vsel %vm961, 4.0, 1.0
          %v994 = vsel %vm962, 4.0, 1.0
          %v995 = vsel %vm963, 4.0, 1.0
          %v996 = vsel %vm964, 4.0, 1.0
          %v997 = vsel %vm965, 4.0, 1.0
          %v998 = vsel %vm966, 4.0, 1.0
          %v999 = vsel %vm967, 4.0, 1.0
          %v1000 = vsel %vm968, 4.0, 1.0
          %v1001 = vsub.f32 %v745, %v777
          %v1002 = vsub.f32 %v746, %v778
          %v1003 = vsub.f32 %v747, %v779
          %v1004 = vsub.f32 %v748, %v780
          %v1005 = vsub.f32 %v749, %v781
          %v1006 = vsub.f32 %v750, %v782
          %v1007 = vsub.f32 %v751, %v783
          %v1008 = vsub.f32 %v752, %v784
          %v1009 = vsub.f32 %v753, %v785
          %v1010 = vsub.f32 %v754, %v786
          %v1011 = vsub.f32 %v755, %v787
          %v1012 = vsub.f32 %v756, %v788
          %v1013 = vsub.f32 %v757, %v789
          %v1014 = vsub.f32 %v758, %v790
          %v1015 = vsub.f32 %v759, %v791
          %v1016 = vsub.f32 %v760, %v792
          %v1017 = vsub.f32 %v761, %v793
          %v1018 = vsub.f32 %v762, %v794
          %v1019 = vsub.f32 %v763, %v795
          %v1020 = vsub.f32 %v764, %v796
          %v1021 = vsub.f32 %v765, %v797
          %v1022 = vsub.f32 %v766, %v798
          %v1023 = vsub.f32 %v767, %v799
          %v1024 = vsub.f32 %v768, %v800
          %v1025 = vsub.f32 %v769, %v801
          %v1026 = vsub.f32 %v770, %v802
          %v1027 = vsub.f32 %v771, %v803
          %v1028 = vsub.f32 %v772, %v804
          %v1029 = vsub.f32 %v773, %v805
          %v1030 = vsub.f32 %v774, %v806
          %v1031 = vsub.f32 %v775, %v807
          %v1032 = vsub.f32 %v776, %v808
          %v1033 = vand.u32 2147483647, %v1001
          %v1034 = vand.u32 2147483647, %v1002
          %v1035 = vand.u32 2147483647, %v1003
          %v1036 = vand.u32 2147483647, %v1004
          %v1037 = vand.u32 2147483647, %v1005
          %v1038 = vand.u32 2147483647, %v1006
          %v1039 = vand.u32 2147483647, %v1007
          %v1040 = vand.u32 2147483647, %v1008
          %v1041 = vand.u32 2147483647, %v1009
          %v1042 = vand.u32 2147483647, %v1010
          %v1043 = vand.u32 2147483647, %v1011
          %v1044 = vand.u32 2147483647, %v1012
          %v1045 = vand.u32 2147483647, %v1013
          %v1046 = vand.u32 2147483647, %v1014
          %v1047 = vand.u32 2147483647, %v1015
          %v1048 = vand.u32 2147483647, %v1016
          %v1049 = vand.u32 2147483647, %v1017
          %v1050 = vand.u32 2147483647, %v1018
          %v1051 = vand.u32 2147483647, %v1019
          %v1052 = vand.u32 2147483647, %v1020
          %v1053 = vand.u32 2147483647, %v1021
          %v1054 = vand.u32 2147483647, %v1022
          %v1055 = vand.u32 2147483647, %v1023
          %v1056 = vand.u32 2147483647, %v1024
          %v1057 = vand.u32 2147483647, %v1025
          %v1058 = vand.u32 2147483647, %v1026
          %v1059 = vand.u32 2147483647, %v1027
          %v1060 = vand.u32 2147483647, %v1028
          %v1061 = vand.u32 2147483647, %v1029
          %v1062 = vand.u32 2147483647, %v1030
          %v1063 = vand.u32 2147483647, %v1031
          %v1064 = vand.u32 2147483647, %v1032
          %v1065 = vmul.f32 %v969, %v1033
          %v1066 = vmul.f32 %v970, %v1034
          %v1067 = vmul.f32 %v971, %v1035
          %v1068 = vmul.f32 %v972, %v1036
          %v1069 = vmul.f32 %v973, %v1037
          %v1070 = vmul.f32 %v974, %v1038
          %v1071 = vmul.f32 %v975, %v1039
          %v1072 = vmul.f32 %v976, %v1040
          %v1073 = vmul.f32 %v977, %v1041
          %v1074 = vmul.f32 %v978, %v1042
          %v1075 = vmul.f32 %v979, %v1043
          %v1076 = vmul.f32 %v980, %v1044
          %v1077 = vmul.f32 %v981, %v1045
          %v1078 = vmul.f32 %v982, %v1046
          %v1079 = vmul.f32 %v983, %v1047
          %v1080 = vmul.f32 %v984, %v1048
          %v1081 = vmul.f32 %v985, %v1049
          %v1082 = vmul.f32 %v986, %v1050
          %v1083 = vmul.f32 %v987, %v1051
          %v1084 = vmul.f32 %v988, %v1052
          %v1085 = vmul.f32 %v989, %v1053
          %v1086 = vmul.f32 %v990, %v1054
          %v1087 = vmul.f32 %v991, %v1055
          %v1088 = vmul.f32 %v992, %v1056
          %v1089 = vmul.f32 %v993, %v1057
          %v1090 = vmul.f32 %v994, %v1058
          %v1091 = vmul.f32 %v995, %v1059
          %v1092 = vmul.f32 %v996, %v1060
          %v1093 = vmul.f32 %v997, %v1061
          %v1094 = vmul.f32 %v998, %v1062
          %v1095 = vmul.f32 %v999, %v1063
          %v1096 = vmul.f32 %v1000, %v1064
          %v1097 = vlaneseq
          %v1098 = vshrl.u32 %v1097, 7
          %v1099 = vadd.s32 %v1098, 8
          %v1100 = vadd.s32 %v1098, 16
          %v1101 = vadd.s32 %v1098, 24
          %v1102 = vadd.s32 %v1098, 32
          %v1103 = vadd.s32 %v1098, 40
          %v1104 = vadd.s32 %v1098, 48
          %v1105 = vadd.s32 %v1098, 56
          %v1106 = vadd.s32 %v1098, 64
          %v1107 = vadd.s32 %v1098, 72
          %v1108 = vadd.s32 %v1098, 80
          %v1109 = vadd.s32 %v1098, 88
          %v1110 = vadd.s32 %v1098, 96
          %v1111 = vadd.s32 %v1098, 104
          %v1112 = vadd.s32 %v1098, 112
          %v1113 = vadd.s32 %v1098, 120
          %v1114 = vadd.s32 %v1098, 128
          %v1115 = vadd.s32 %v1098, 136
          %v1116 = vadd.s32 %v1098, 144
          %v1117 = vadd.s32 %v1098, 152
          %v1118 = vadd.s32 %v1098, 160
          %v1119 = vadd.s32 %v1098, 168
          %v1120 = vadd.s32 %v1098, 176
          %v1121 = vadd.s32 %v1098, 184
          %v1122 = vadd.s32 %v1098, 192
          %v1123 = vadd.s32 %v1098, 200
          %v1124 = vadd.s32 %v1098, 208
          %v1125 = vadd.s32 %v1098, 216
          %v1126 = vadd.s32 %v1098, 224
          %v1127 = vadd.s32 %v1098, 232
          %v1128 = vadd.s32 %v1098, 240
          %v1129 = vadd.s32 %v1098, 248
          %v1130 = vstv 0
          %v1131 = vadd.s32 %v1130, %v1098
          %v1132 = vadd.s32 %v1130, %v1099
          %v1133 = vadd.s32 %v1130, %v1100
          %v1134 = vadd.s32 %v1130, %v1101
          %v1135 = vadd.s32 %v1130, %v1102
          %v1136 = vadd.s32 %v1130, %v1103
          %v1137 = vadd.s32 %v1130, %v1104
          %v1138 = vadd.s32 %v1130, %v1105
          %v1139 = vadd.s32 %v1130, %v1106
          %v1140 = vadd.s32 %v1130, %v1107
          %v1141 = vadd.s32 %v1130, %v1108
          %v1142 = vadd.s32 %v1130, %v1109
          %v1143 = vadd.s32 %v1130, %v1110
          %v1144 = vadd.s32 %v1130, %v1111
          %v1145 = vadd.s32 %v1130, %v1112
          %v1146 = vadd.s32 %v1130, %v1113
          %v1147 = vadd.s32 %v1130, %v1114
          %v1148 = vadd.s32 %v1130, %v1115
          %v1149 = vadd.s32 %v1130, %v1116
          %v1150 = vadd.s32 %v1130, %v1117
          %v1151 = vadd.s32 %v1130, %v1118
          %v1152 = vadd.s32 %v1130, %v1119
          %v1153 = vadd.s32 %v1130, %v1120
          %v1154 = vadd.s32 %v1130, %v1121
          %v1155 = vadd.s32 %v1130, %v1122
          %v1156 = vadd.s32 %v1130, %v1123
          %v1157 = vadd.s32 %v1130, %v1124
          %v1158 = vadd.s32 %v1130, %v1125
          %v1159 = vadd.s32 %v1130, %v1126
          %v1160 = vadd.s32 %v1130, %v1127
          %v1161 = vadd.s32 %v1130, %v1128
          %v1162 = vadd.s32 %v1130, %v1129
          %v1163 = vstv %s288
          %vm1164 = vcmp.lt.s32.totalorder %v1131, %v1163
          %vm1165 = vcmp.lt.s32.totalorder %v1132, %v1163
          %vm1166 = vcmp.lt.s32.totalorder %v1133, %v1163
          %vm1167 = vcmp.lt.s32.totalorder %v1134, %v1163
          %vm1168 = vcmp.lt.s32.totalorder %v1135, %v1163
          %vm1169 = vcmp.lt.s32.totalorder %v1136, %v1163
          %vm1170 = vcmp.lt.s32.totalorder %v1137, %v1163
          %vm1171 = vcmp.lt.s32.totalorder %v1138, %v1163
          %vm1172 = vcmp.lt.s32.totalorder %v1139, %v1163
          %vm1173 = vcmp.lt.s32.totalorder %v1140, %v1163
          %vm1174 = vcmp.lt.s32.totalorder %v1141, %v1163
          %vm1175 = vcmp.lt.s32.totalorder %v1142, %v1163
          %vm1176 = vcmp.lt.s32.totalorder %v1143, %v1163
          %vm1177 = vcmp.lt.s32.totalorder %v1144, %v1163
          %vm1178 = vcmp.lt.s32.totalorder %v1145, %v1163
          %vm1179 = vcmp.lt.s32.totalorder %v1146, %v1163
          %vm1180 = vcmp.lt.s32.totalorder %v1147, %v1163
          %vm1181 = vcmp.lt.s32.totalorder %v1148, %v1163
          %vm1182 = vcmp.lt.s32.totalorder %v1149, %v1163
          %vm1183 = vcmp.lt.s32.totalorder %v1150, %v1163
          %vm1184 = vcmp.lt.s32.totalorder %v1151, %v1163
          %vm1185 = vcmp.lt.s32.totalorder %v1152, %v1163
          %vm1186 = vcmp.lt.s32.totalorder %v1153, %v1163
          %vm1187 = vcmp.lt.s32.totalorder %v1154, %v1163
          %vm1188 = vcmp.lt.s32.totalorder %v1155, %v1163
          %vm1189 = vcmp.lt.s32.totalorder %v1156, %v1163
          %vm1190 = vcmp.lt.s32.totalorder %v1157, %v1163
          %vm1191 = vcmp.lt.s32.totalorder %v1158, %v1163
          %vm1192 = vcmp.lt.s32.totalorder %v1159, %v1163
          %vm1193 = vcmp.lt.s32.totalorder %v1160, %v1163
          %vm1194 = vcmp.lt.s32.totalorder %v1161, %v1163
          %vm1195 = vcmp.lt.s32.totalorder %v1162, %v1163
          %v1196 = vsel %vm1164, 1, 0
          %v1197 = vsel %vm1165, 1, 0
          %v1198 = vsel %vm1166, 1, 0
          %v1199 = vsel %vm1167, 1, 0
          %v1200 = vsel %vm1168, 1, 0
          %v1201 = vsel %vm1169, 1, 0
          %v1202 = vsel %vm1170, 1, 0
          %v1203 = vsel %vm1171, 1, 0
          %v1204 = vsel %vm1172, 1, 0
          %v1205 = vsel %vm1173, 1, 0
          %v1206 = vsel %vm1174, 1, 0
          %v1207 = vsel %vm1175, 1, 0
          %v1208 = vsel %vm1176, 1, 0
          %v1209 = vsel %vm1177, 1, 0
          %v1210 = vsel %vm1178, 1, 0
          %v1211 = vsel %vm1179, 1, 0
          %v1212 = vsel %vm1180, 1, 0
          %v1213 = vsel %vm1181, 1, 0
          %v1214 = vsel %vm1182, 1, 0
          %v1215 = vsel %vm1183, 1, 0
          %v1216 = vsel %vm1184, 1, 0
          %v1217 = vsel %vm1185, 1, 0
          %v1218 = vsel %vm1186, 1, 0
          %v1219 = vsel %vm1187, 1, 0
          %v1220 = vsel %vm1188, 1, 0
          %v1221 = vsel %vm1189, 1, 0
          %v1222 = vsel %vm1190, 1, 0
          %v1223 = vsel %vm1191, 1, 0
          %v1224 = vsel %vm1192, 1, 0
          %v1225 = vsel %vm1193, 1, 0
          %v1226 = vsel %vm1194, 1, 0
          %v1227 = vsel %vm1195, 1, 0
          %vm1228 = vcmp.eq.s32.totalorder %v1196, 1
          %vm1229 = vcmp.eq.s32.totalorder %v1197, 1
          %vm1230 = vcmp.eq.s32.totalorder %v1198, 1
          %vm1231 = vcmp.eq.s32.totalorder %v1199, 1
          %vm1232 = vcmp.eq.s32.totalorder %v1200, 1
          %vm1233 = vcmp.eq.s32.totalorder %v1201, 1
          %vm1234 = vcmp.eq.s32.totalorder %v1202, 1
          %vm1235 = vcmp.eq.s32.totalorder %v1203, 1
          %vm1236 = vcmp.eq.s32.totalorder %v1204, 1
          %vm1237 = vcmp.eq.s32.totalorder %v1205, 1
          %vm1238 = vcmp.eq.s32.totalorder %v1206, 1
          %vm1239 = vcmp.eq.s32.totalorder %v1207, 1
          %vm1240 = vcmp.eq.s32.totalorder %v1208, 1
          %vm1241 = vcmp.eq.s32.totalorder %v1209, 1
          %vm1242 = vcmp.eq.s32.totalorder %v1210, 1
          %vm1243 = vcmp.eq.s32.totalorder %v1211, 1
          %vm1244 = vcmp.eq.s32.totalorder %v1212, 1
          %vm1245 = vcmp.eq.s32.totalorder %v1213, 1
          %vm1246 = vcmp.eq.s32.totalorder %v1214, 1
          %vm1247 = vcmp.eq.s32.totalorder %v1215, 1
          %vm1248 = vcmp.eq.s32.totalorder %v1216, 1
          %vm1249 = vcmp.eq.s32.totalorder %v1217, 1
          %vm1250 = vcmp.eq.s32.totalorder %v1218, 1
          %vm1251 = vcmp.eq.s32.totalorder %v1219, 1
          %vm1252 = vcmp.eq.s32.totalorder %v1220, 1
          %vm1253 = vcmp.eq.s32.totalorder %v1221, 1
          %vm1254 = vcmp.eq.s32.totalorder %v1222, 1
          %vm1255 = vcmp.eq.s32.totalorder %v1223, 1
          %vm1256 = vcmp.eq.s32.totalorder %v1224, 1
          %vm1257 = vcmp.eq.s32.totalorder %v1225, 1
          %vm1258 = vcmp.eq.s32.totalorder %v1226, 1
          %vm1259 = vcmp.eq.s32.totalorder %v1227, 1
          %v1260 = vsel %vm1228, %v1065, 0.0
          %v1261 = vsel %vm1229, %v1066, 0.0
          %v1262 = vsel %vm1230, %v1067, 0.0
          %v1263 = vsel %vm1231, %v1068, 0.0
          %v1264 = vsel %vm1232, %v1069, 0.0
          %v1265 = vsel %vm1233, %v1070, 0.0
          %v1266 = vsel %vm1234, %v1071, 0.0
          %v1267 = vsel %vm1235, %v1072, 0.0
          %v1268 = vsel %vm1236, %v1073, 0.0
          %v1269 = vsel %vm1237, %v1074, 0.0
          %v1270 = vsel %vm1238, %v1075, 0.0
          %v1271 = vsel %vm1239, %v1076, 0.0
          %v1272 = vsel %vm1240, %v1077, 0.0
          %v1273 = vsel %vm1241, %v1078, 0.0
          %v1274 = vsel %vm1242, %v1079, 0.0
          %v1275 = vsel %vm1243, %v1080, 0.0
          %v1276 = vsel %vm1244, %v1081, 0.0
          %v1277 = vsel %vm1245, %v1082, 0.0
          %v1278 = vsel %vm1246, %v1083, 0.0
          %v1279 = vsel %vm1247, %v1084, 0.0
          %v1280 = vsel %vm1248, %v1085, 0.0
          %v1281 = vsel %vm1249, %v1086, 0.0
          %v1282 = vsel %vm1250, %v1087, 0.0
          %v1283 = vsel %vm1251, %v1088, 0.0
          %v1284 = vsel %vm1252, %v1089, 0.0
          %v1285 = vsel %vm1253, %v1090, 0.0
          %v1286 = vsel %vm1254, %v1091, 0.0
          %v1287 = vsel %vm1255, %v1092, 0.0
          %v1288 = vsel %vm1256, %v1093, 0.0
          %v1289 = vsel %vm1257, %v1094, 0.0
          %v1290 = vsel %vm1258, %v1095, 0.0
          %v1291 = vsel %vm1259, %v1096, 0.0
          %v1292 = vld [vmem:[#allocation2] sm:$0xff]
          %v1293 = vld [vmem:[#allocation2 + $0x8] sm:$0xff]
          %v1294 = vld [vmem:[#allocation2 + $0x10] sm:$0xff]
          %v1295 = vld [vmem:[#allocation2 + $0x18] sm:$0xff]
          %v1296 = vld [vmem:[#allocation2 + $0x20] sm:$0xff]
          %v1297 = vld [vmem:[#allocation2 + $0x28] sm:$0xff]
          %v1298 = vld [vmem:[#allocation2 + $0x30] sm:$0xff]
          %v1299 = vld [vmem:[#allocation2 + $0x38] sm:$0xff]
          %v1300 = vld [vmem:[#allocation2 + $0x40] sm:$0xff]
          %v1301 = vld [vmem:[#allocation2 + $0x48] sm:$0xff]
          %v1302 = vld [vmem:[#allocation2 + $0x50] sm:$0xff]
          %v1303 = vld [vmem:[#allocation2 + $0x58] sm:$0xff]
          %v1304 = vld [vmem:[#allocation2 + $0x60] sm:$0xff]
          %v1305 = vld [vmem:[#allocation2 + $0x68] sm:$0xff]
          %v1306 = vld [vmem:[#allocation2 + $0x70] sm:$0xff]
          %v1307 = vld [vmem:[#allocation2 + $0x78] sm:$0xff]
          %v1308 = vld [vmem:[#allocation2 + $0x80] sm:$0xff]
          %v1309 = vld [vmem:[#allocation2 + $0x88] sm:$0xff]
          %v1310 = vld [vmem:[#allocation2 + $0x90] sm:$0xff]
          %v1311 = vld [vmem:[#allocation2 + $0x98] sm:$0xff]
          %v1312 = vld [vmem:[#allocation2 + $0xa0] sm:$0xff]
          %v1313 = vld [vmem:[#allocation2 + $0xa8] sm:$0xff]
          %v1314 = vld [vmem:[#allocation2 + $0xb0] sm:$0xff]
          %v1315 = vld [vmem:[#allocation2 + $0xb8] sm:$0xff]
          %v1316 = vld [vmem:[#allocation2 + $0xc0] sm:$0xff]
          %v1317 = vld [vmem:[#allocation2 + $0xc8] sm:$0xff]
          %v1318 = vld [vmem:[#allocation2 + $0xd0] sm:$0xff]
          %v1319 = vld [vmem:[#allocation2 + $0xd8] sm:$0xff]
          %v1320 = vld [vmem:[#allocation2 + $0xe0] sm:$0xff]
          %v1321 = vld [vmem:[#allocation2 + $0xe8] sm:$0xff]
          %v1322 = vld [vmem:[#allocation2 + $0xf0] sm:$0xff]
          %v1323 = vld [vmem:[#allocation2 + $0xf8] sm:$0xff]
          %v1324 = vadd.f32 %v1292, %v1260
          %v1325 = vadd.f32 %v1293, %v1261
          %v1326 = vadd.f32 %v1294, %v1262
          %v1327 = vadd.f32 %v1295, %v1263
          %v1328 = vadd.f32 %v1296, %v1264
          %v1329 = vadd.f32 %v1297, %v1265
          %v1330 = vadd.f32 %v1298, %v1266
          %v1331 = vadd.f32 %v1299, %v1267
          %v1332 = vadd.f32 %v1300, %v1268
          %v1333 = vadd.f32 %v1301, %v1269
          %v1334 = vadd.f32 %v1302, %v1270
          %v1335 = vadd.f32 %v1303, %v1271
          %v1336 = vadd.f32 %v1304, %v1272
          %v1337 = vadd.f32 %v1305, %v1273
          %v1338 = vadd.f32 %v1306, %v1274
          %v1339 = vadd.f32 %v1307, %v1275
          %v1340 = vadd.f32 %v1308, %v1276
          %v1341 = vadd.f32 %v1309, %v1277
          %v1342 = vadd.f32 %v1310, %v1278
          %v1343 = vadd.f32 %v1311, %v1279
          %v1344 = vadd.f32 %v1312, %v1280
          %v1345 = vadd.f32 %v1313, %v1281
          %v1346 = vadd.f32 %v1314, %v1282
          %v1347 = vadd.f32 %v1315, %v1283
          %v1348 = vadd.f32 %v1316, %v1284
          %v1349 = vadd.f32 %v1317, %v1285
          %v1350 = vadd.f32 %v1318, %v1286
          %v1351 = vadd.f32 %v1319, %v1287
          %v1352 = vadd.f32 %v1320, %v1288
          %v1353 = vadd.f32 %v1321, %v1289
          %v1354 = vadd.f32 %v1322, %v1290
          %v1355 = vadd.f32 %v1323, %v1291
          %1356 = vst [vmem:[#allocation2] sm:$0xff] %v1324
          %1357 = vst [vmem:[#allocation2 + $0x8] sm:$0xff] %v1325
          %1358 = vst [vmem:[#allocation2 + $0x10] sm:$0xff] %v1326
          %1359 = vst [vmem:[#allocation2 + $0x18] sm:$0xff] %v1327
          %1360 = vst [vmem:[#allocation2 + $0x20] sm:$0xff] %v1328
          %1361 = vst [vmem:[#allocation2 + $0x28] sm:$0xff] %v1329
          %1362 = vst [vmem:[#allocation2 + $0x30] sm:$0xff] %v1330
          %1363 = vst [vmem:[#allocation2 + $0x38] sm:$0xff] %v1331
          %1364 = vst [vmem:[#allocation2 + $0x40] sm:$0xff] %v1332
          %1365 = vst [vmem:[#allocation2 + $0x48] sm:$0xff] %v1333
          %1366 = vst [vmem:[#allocation2 + $0x50] sm:$0xff] %v1334
          %1367 = vst [vmem:[#allocation2 + $0x58] sm:$0xff] %v1335
          %1368 = vst [vmem:[#allocation2 + $0x60] sm:$0xff] %v1336
          %1369 = vst [vmem:[#allocation2 + $0x68] sm:$0xff] %v1337
          %1370 = vst [vmem:[#allocation2 + $0x70] sm:$0xff] %v1338
          %1371 = vst [vmem:[#allocation2 + $0x78] sm:$0xff] %v1339
          %1372 = vst [vmem:[#allocation2 + $0x80] sm:$0xff] %v1340
          %1373 = vst [vmem:[#allocation2 + $0x88] sm:$0xff] %v1341
          %1374 = vst [vmem:[#allocation2 + $0x90] sm:$0xff] %v1342
          %1375 = vst [vmem:[#allocation2 + $0x98] sm:$0xff] %v1343
          %1376 = vst [vmem:[#allocation2 + $0xa0] sm:$0xff] %v1344
          %1377 = vst [vmem:[#allocation2 + $0xa8] sm:$0xff] %v1345
          %1378 = vst [vmem:[#allocation2 + $0xb0] sm:$0xff] %v1346
          %1379 = vst [vmem:[#allocation2 + $0xb8] sm:$0xff] %v1347
          %1380 = vst [vmem:[#allocation2 + $0xc0] sm:$0xff] %v1348
          %1381 = vst [vmem:[#allocation2 + $0xc8] sm:$0xff] %v1349
          %1382 = vst [vmem:[#allocation2 + $0xd0] sm:$0xff] %v1350
          %1383 = vst [vmem:[#allocation2 + $0xd8] sm:$0xff] %v1351
          %1384 = vst [vmem:[#allocation2 + $0xe0] sm:$0xff] %v1352
          %1385 = vst [vmem:[#allocation2 + $0xe8] sm:$0xff] %v1353
          %1386 = vst [vmem:[#allocation2 + $0xf0] sm:$0xff] %v1354
          %1387 = vst [vmem:[#allocation2 + $0xf8] sm:$0xff] %v1355
        $region48: #{tpu_custom_call.1} parent=27 // pred_fallthru
          _
        %p1388 = scmp.eq.s32.totalorder %s25, 1
        // Predicated region
        $region49: #{tpu_custom_call.1} parent=27 // pred_check
          %p1389 = pneg %p1388
        $region50: #{tpu_custom_call.1} parent=27 // pred_check_branch
          %1391 = sbr.rel (%p1389) target = $region52
        $region51: #{tpu_custom_call.1} parent=27 // pred_region
          %v1392 = vld [vmem:[#allocation2] sm:$0xff]
          %v1393 = vld [vmem:[#allocation2 + $0x8] sm:$0xff]
          %v1394 = vld [vmem:[#allocation2 + $0x10] sm:$0xff]
          %v1395 = vld [vmem:[#allocation2 + $0x18] sm:$0xff]
          %v1396 = vld [vmem:[#allocation2 + $0x20] sm:$0xff]
          %v1397 = vld [vmem:[#allocation2 + $0x28] sm:$0xff]
          %v1398 = vld [vmem:[#allocation2 + $0x30] sm:$0xff]
          %v1399 = vld [vmem:[#allocation2 + $0x38] sm:$0xff]
          %v1400 = vld [vmem:[#allocation2 + $0x40] sm:$0xff]
          %v1401 = vld [vmem:[#allocation2 + $0x48] sm:$0xff]
          %v1402 = vld [vmem:[#allocation2 + $0x50] sm:$0xff]
          %v1403 = vld [vmem:[#allocation2 + $0x58] sm:$0xff]
          %v1404 = vld [vmem:[#allocation2 + $0x60] sm:$0xff]
          %v1405 = vld [vmem:[#allocation2 + $0x68] sm:$0xff]
          %v1406 = vld [vmem:[#allocation2 + $0x70] sm:$0xff]
          %v1407 = vld [vmem:[#allocation2 + $0x78] sm:$0xff]
          %v1408 = vld [vmem:[#allocation2 + $0x80] sm:$0xff]
          %v1409 = vld [vmem:[#allocation2 + $0x88] sm:$0xff]
          %v1410 = vld [vmem:[#allocation2 + $0x90] sm:$0xff]
          %v1411 = vld [vmem:[#allocation2 + $0x98] sm:$0xff]
          %v1412 = vld [vmem:[#allocation2 + $0xa0] sm:$0xff]
          %v1413 = vld [vmem:[#allocation2 + $0xa8] sm:$0xff]
          %v1414 = vld [vmem:[#allocation2 + $0xb0] sm:$0xff]
          %v1415 = vld [vmem:[#allocation2 + $0xb8] sm:$0xff]
          %v1416 = vld [vmem:[#allocation2 + $0xc0] sm:$0xff]
          %v1417 = vld [vmem:[#allocation2 + $0xc8] sm:$0xff]
          %v1418 = vld [vmem:[#allocation2 + $0xd0] sm:$0xff]
          %v1419 = vld [vmem:[#allocation2 + $0xd8] sm:$0xff]
          %v1420 = vld [vmem:[#allocation2 + $0xe0] sm:$0xff]
          %v1421 = vld [vmem:[#allocation2 + $0xe8] sm:$0xff]
          %v1422 = vld [vmem:[#allocation2 + $0xf0] sm:$0xff]
          %v1423 = vld [vmem:[#allocation2 + $0xf8] sm:$0xff]
          %v1424 = vadd.f32 %v1392, %v1393
          %v1425 = vadd.f32 %v1424, %v1394
          %v1426 = vadd.f32 %v1425, %v1395
          %v1427 = vadd.f32 %v1426, %v1396
          %v1428 = vadd.f32 %v1427, %v1397
          %v1429 = vadd.f32 %v1428, %v1398
          %v1430 = vadd.f32 %v1429, %v1399
          %v1431 = vadd.f32 %v1430, %v1400
          %v1432 = vadd.f32 %v1431, %v1401
          %v1433 = vadd.f32 %v1432, %v1402
          %v1434 = vadd.f32 %v1433, %v1403
          %v1435 = vadd.f32 %v1434, %v1404
          %v1436 = vadd.f32 %v1435, %v1405
          %v1437 = vadd.f32 %v1436, %v1406
          %v1438 = vadd.f32 %v1437, %v1407
          %v1439 = vadd.f32 %v1438, %v1408
          %v1440 = vadd.f32 %v1439, %v1409
          %v1441 = vadd.f32 %v1440, %v1410
          %v1442 = vadd.f32 %v1441, %v1411
          %v1443 = vadd.f32 %v1442, %v1412
          %v1444 = vadd.f32 %v1443, %v1413
          %v1445 = vadd.f32 %v1444, %v1414
          %v1446 = vadd.f32 %v1445, %v1415
          %v1447 = vadd.f32 %v1446, %v1416
          %v1448 = vadd.f32 %v1447, %v1417
          %v1449 = vadd.f32 %v1448, %v1418
          %v1450 = vadd.f32 %v1449, %v1419
          %v1451 = vadd.f32 %v1450, %v1420
          %v1452 = vadd.f32 %v1451, %v1421
          %v1453 = vadd.f32 %v1452, %v1422
          %v1454 = vadd.f32 %v1453, %v1423
          %v1455 = vrot.slane %v1454, 4
          %v1456 = vadd.f32 %v1454, %v1455
          %v1457 = vrot.slane %v1456, 2
          %v1458 = vadd.f32 %v1456, %v1457
          %v1459 = vrot.slane %v1458, 1
          %v1460 = vadd.f32 %v1458, %v1459
          %1461 = vst [vmem:[#allocation8] sm:$0x1] %v1460
        $region52: #{tpu_custom_call.1} parent=27 // pred_fallthru
          _
        // Predicated region
        $region53: #{tpu_custom_call.1} parent=27 // pred_check
          %p1462 = pneg %p110
        $region54: #{tpu_custom_call.1} parent=27 // pred_check_branch
          %1464 = sbr.rel (%p1462) target = $region56
        $region55: #{tpu_custom_call.1} parent=27 // pred_region
          %s1466 = ssub.s32 16, 16
          %1467 = vsyncadd [#allocation5], %s1466
          %s1468 = smul.addr %s24, 16
          %s1469 = scalar_lea.hbm %s2, %s1468
          %s1471 = sshll.u32 [#allocation8], 4
          %s1472 = int_to_ptr.vmem [resolvable:$true] %s1471
          %1474 = dma.vmem_to_hbm [thread:$0]  %s1472, 16, %s1469, [#allocation5]
        $region56: #{tpu_custom_call.1} parent=27 // pred_fallthru
          _
        // Predicated region
        $region57: #{tpu_custom_call.1} parent=27 // pred_check
          %p1475 = pneg %p110
        $region58: #{tpu_custom_call.1} parent=27 // pred_check_branch
          %1477 = sbr.rel (%p1475) target = $region60
        $region59: #{tpu_custom_call.1} parent=27 // pred_region
          %1478 = dma.done [#allocation5], 16
        $region60: #{tpu_custom_call.1} parent=27 // pred_fallthru
          _
      $region28: #{tpu_custom_call.1} parent=5 // pred_fallthru
        _
      %p1479 = scmp.le.s32.totalorder 2, %s15
      // Predicated region
      $region61: #{tpu_custom_call.1} parent=5 // pred_check
        %p1480 = pneg %p1479
      $region62: #{tpu_custom_call.1} parent=5 // pred_check_branch
        %1482 = sbr.rel (%p1480) target = $region64
      $region63: #{tpu_custom_call.1} parent=5 // pred_region
        %s1483 = ssub.s32 %s15, 2
      $region64: #{tpu_custom_call.1} parent=5 // pred_fallthru
        _
    $region6: #{tpu_custom_call.1} parent=1 // loop_footer
      %s19 = sadd.s32 1, %s15
    $region7: #{tpu_custom_call.1} parent=1 // loop_footer_branch
      %14 = sbr.rel target = $region3
    $region8: #{tpu_custom_call.1} parent=1 // loop_exit
      _
    %1484 = vsyncpa [#allocation4], 1
    %s1485 = scalar_lea.sflag [#allocation4], 1
    %1486 = vsyncpa %s1485, 1
    %1487 = vsyncpa [#allocation7], 1
    %s1488 = scalar_lea.sflag [#allocation7], 1
    %1489 = vsyncpa %s1488, 1
    %1490 = vsyncpa [#allocation5], 1
    %s1491 = scalar_lea.sflag [#allocation5], 1
    %1492 = vsyncpa %s1491, 1

</llo_original>
